<compile_context>
chip_gen: v7x
topology: tpu7x:2x2x1
jax: 0.10.0
libtpu: 0.0.40
codegen_flags: <defaults>
</compile_context>

<pallas_src>
from functools import partial
import math

import jax
import jax.numpy as jnp
from jax.experimental import pallas as pl
from jax.experimental.pallas import tpu as pltpu

# --- synthetic SPACE config (in place of space_cfg) ---
FG_SIGMA = 0.15
BG_SIGMA = 0.15
FIX_ALPHA_STEPS = 0          # global_step >= this => use predicted alpha
FIX_ALPHA_VALUE = 0.1
Z_DIM = 32


# ----------------------------------------------------------------------------
# Single fused Pallas kernel: encoders + decoders + Space.forward fusion
# ----------------------------------------------------------------------------
def _space_forward_kernel(
    x_ref, pool_ref,
    w_enc_bg_ref, b_enc_bg_ref, w_enc_fg_ref, b_enc_fg_ref,
    w_dec_bg_ref, b_dec_bg_ref, w_dec_fg_ref, b_dec_fg_ref,
    y_ref, alpha_ref, stats_ref,
    *, C, HW, fix_alpha,
):
    f32 = jnp.float32
    x = x_ref[...]                                   # (B, C*HW), lane-dense
    B = x.shape[0]
    CHW = C * HW

    # ---- stand-in encoders: in-kernel per-channel mean pool (MXU) + matmuls ----
    feat = jnp.dot(x, pool_ref[...], preferred_element_type=f32)          # (B, C)
    z_bg = jnp.tanh(
        jnp.dot(feat, w_enc_bg_ref[...], preferred_element_type=f32)
        + b_enc_bg_ref[...])                                              # (B, Z)
    z_fg = jnp.tanh(
        jnp.dot(feat, w_enc_fg_ref[...], preferred_element_type=f32)
        + b_enc_fg_ref[...])                                              # (B, Z)

    # ---- stand-in decoders (MXU) ----
    bg_logits = (jnp.dot(z_bg, w_dec_bg_ref[...], preferred_element_type=f32)
                 + b_dec_bg_ref[...])                                     # (B, C*HW)
    fg_dec = (jnp.dot(z_fg, w_dec_fg_ref[...], preferred_element_type=f32)
              + b_dec_fg_ref[...])                                        # (B, (C+1)*HW)
    fg_logits = fg_dec[:, :CHW]            # 128-aligned lane slice
    alpha_logits = fg_dec[:, CHW:]         # (B, HW)

    # ---- Space.forward fusion ----
    fg = jax.nn.sigmoid(fg_logits)                   # (B, C*HW)
    bg = jax.nn.sigmoid(bg_logits)                   # (B, C*HW)
    alpha = jax.nn.sigmoid(alpha_logits)             # (B, HW)
    if fix_alpha:   # static python bool: global_step < fix_alpha_steps
        alpha = jnp.full_like(alpha, FIX_ALPHA_VALUE)

    # reference semantics: log(alpha + 1e-5) / log(1 - alpha + 1e-5),
    # computed once per pixel (per (B, HW) element), then broadcast over C.
    log_a = jnp.log(alpha + 1e-5)
    log_1ma = jnp.log(1.0 - alpha + 1e-5)

    def tile_c(a):   # broadcast a (B, HW) per-pixel map across C channels (aligned lane concat)
        return jnp.concatenate([a] * C, axis=-1)

    alpha_c = tile_c(alpha)

    log_c_fg = -0.5 * math.log(2.0 * math.pi * FG_SIGMA ** 2)
    log_c_bg = -0.5 * math.log(2.0 * math.pi * BG_SIGMA ** 2)
    inv_fg = 1.0 / (2.0 * FG_SIGMA ** 2)
    inv_bg = 1.0 / (2.0 * BG_SIGMA ** 2)

    # Gaussian pixel log-likelihoods + log alpha terms
    fg_ll = log_c_fg - (x - fg) ** 2 * inv_fg + tile_c(log_a)
    bg_ll = log_c_bg - (x - bg) ** 2 * inv_bg + tile_c(log_1ma)

    # logsumexp over the {fg, bg} stack: max + log(1 + exp(-|diff|))
    # (identical to the max-subtracted reference form, but only 1 exp + 1 log)
    m = jnp.maximum(fg_ll, bg_ll)
    log_like = m + jnp.log(1.0 + jnp.exp(-jnp.abs(fg_ll - bg_ll)))
    log_like_sum = jnp.sum(log_like, axis=-1, keepdims=True)              # (B, 1)

    # composed image and per-sample MSE (sum over C*H*W, like the reference)
    y = bg + alpha_c * (fg - bg)                                          # (B, C*HW)
    mse = jnp.sum((y - x) ** 2, axis=-1, keepdims=True)                   # (B, 1)

    # TODO(synk): real SpaceFg/SpaceBg KL terms; unit-Gaussian stand-in here.
    kl_fg = 0.5 * jnp.sum(z_fg ** 2, axis=-1, keepdims=True)
    kl_bg = 0.5 * jnp.sum(z_bg ** 2, axis=-1, keepdims=True)
    elbo = log_like_sum - kl_bg - kl_fg                                   # (B, 1)

    y_ref[...] = y.astype(y_ref.dtype)
    alpha_ref[...] = alpha.astype(alpha_ref.dtype)
    # pack the three per-sample scalars into one lane-dense slab, single store
    stats_ref[...] = jnp.concatenate(
        [jnp.broadcast_to(log_like_sum, (B, 128)),
         jnp.broadcast_to(mse, (B, 128)),
         jnp.broadcast_to(elbo, (B, 128))], axis=-1)


# ----------------------------------------------------------------------------
# Parameters (deterministic, in-script) and the Space.forward wrapper
# ----------------------------------------------------------------------------
def init_params(key, C=3, HW=256, Z=Z_DIM):
    ks = jax.random.split(key, 4)
    s = 0.1
    return {
        "w_enc_bg": s * jax.random.normal(ks[0], (C, Z), jnp.float32),
        "b_enc_bg": jnp.zeros((1, Z), jnp.float32),
        "w_enc_fg": s * jax.random.normal(ks[1], (C, Z), jnp.float32),
        "b_enc_fg": jnp.zeros((1, Z), jnp.float32),
        "w_dec_bg": s * jax.random.normal(ks[2], (Z, C * HW), jnp.float32),
        "b_dec_bg": jnp.zeros((1, C * HW), jnp.float32),
        "w_dec_fg": s * jax.random.normal(ks[3], (Z, (C + 1) * HW), jnp.float32),
        "b_dec_fg": jnp.zeros((1, (C + 1) * HW), jnp.float32),
    }


def _mean_pool_matrix(C, HW, dtype=jnp.float32):
    # (C*HW, C): averages each channel's HW pixels; lets the kernel do the
    # per-channel mean-pool on the MXU without any in-kernel relayout.
    eye = jnp.eye(C, dtype=dtype)
    return jnp.repeat(eye, HW, axis=0) / HW


def space_forward(params, x, global_step=100000000):
    # Accept (B, T, C, H, W) like the PyTorch module
    if x.ndim == 5:
        B, T, C, H, W = x.shape
        x = x.reshape(B * T, C, H, W)
    B, C, H, W = x.shape
    HW = H * W
    CHW = C * HW
    Z = params["w_enc_bg"].shape[1]

    x2 = x.reshape(B, CHW)                  # lane-dense activation layout
    pool = _mean_pool_matrix(C, HW)

    # matches reference gating: alpha fixed only when 0 < global_step < fix_alpha_steps
    fix_alpha = bool(global_step) and (global_step < FIX_ALPHA_STEPS)

    kernel = partial(_space_forward_kernel, C=C, HW=HW, fix_alpha=fix_alpha)

    def full(shape):
        return pl.BlockSpec(shape, lambda i, _s=shape: (0,) * len(_s))

    y2, alpha2, stats = pl.pallas_call(
        kernel,
        out_shape=(
            jax.ShapeDtypeStruct((B, CHW), jnp.float32),      # y
            jax.ShapeDtypeStruct((B, HW), jnp.float32),       # alpha map
            jax.ShapeDtypeStruct((B, 3 * 128), jnp.float32),  # [log_like | mse | elbo]
        ),
        grid=(1,),  # whole batch in one block; for large B tile the batch & mark "parallel"
        in_specs=[
            full((B, CHW)), full((CHW, C)),
            full((C, Z)), full((1, Z)), full((C, Z)), full((1, Z)),
            full((Z, CHW)), full((1, CHW)),
            full((Z, (C + 1) * HW)), full((1, (C + 1) * HW)),
        ],
        out_specs=(
            full((B, CHW)), full((B, HW)), full((B, 3 * 128)),
        ),
        compiler_params=pltpu.CompilerParams(dimension_semantics=("arbitrary",)),
    )(x2, pool,
      params["w_enc_bg"], params["b_enc_bg"], params["w_enc_fg"], params["b_enc_fg"],
      params["w_dec_bg"], params["b_dec_bg"], params["w_dec_fg"], params["b_dec_fg"])

    log_like = stats[:, 0]       # (B,)
    mse = stats[:, 128]          # (B,)
    elbo = stats[:, 256]         # (B,)
    loss = -jnp.sum(elbo)

    x_rgb = x[:, :3]
    log = {
        "imgs": x_rgb,
        "y": y2.reshape(B, C, H, W),
        "alpha_map": alpha2.reshape(B, 1, H, W),
        "mse": mse,
        "log_like": log_like,
        "elbo_loss": loss,
    }
    return loss, log


if __name__ == "__main__":
    key = jax.random.PRNGKey(0)
    k_x, k_p = jax.random.split(key)
    B, C, H, W = 2, 3, 16, 16
    x = jax.random.uniform(k_x, (B, C, H, W), dtype=jnp.float32)
    params = init_params(k_p, C=C, HW=H * W)

    loss, log = space_forward(params, x, global_step=100000000)
    jax.block_until_ready(loss)
    jax.block_until_ready(log["y"])
    jax.block_until_ready(log["mse"])
    print("KERNEL_OK")
</pallas_src>

<mosaic_0001>
module attributes {stable_mosaic.version = 11 : i64} {
  func.func @_space_forward_kernel(%arg0: i32, %arg1: memref<2x768xf32, #tpu.memory_space<vmem>>, %arg2: memref<768x3xf32, #tpu.memory_space<vmem>>, %arg3: memref<3x32xf32, #tpu.memory_space<vmem>>, %arg4: memref<1x32xf32, #tpu.memory_space<vmem>>, %arg5: memref<3x32xf32, #tpu.memory_space<vmem>>, %arg6: memref<1x32xf32, #tpu.memory_space<vmem>>, %arg7: memref<32x768xf32, #tpu.memory_space<vmem>>, %arg8: memref<1x768xf32, #tpu.memory_space<vmem>>, %arg9: memref<32x1024xf32, #tpu.memory_space<vmem>>, %arg10: memref<1x1024xf32, #tpu.memory_space<vmem>>, %arg11: memref<2x768xf32, #tpu.memory_space<vmem>>, %arg12: memref<2x256xf32, #tpu.memory_space<vmem>>, %arg13: memref<2x384xf32, #tpu.memory_space<vmem>>) attributes {dimension_semantics = [#tpu.dimension_semantics<arbitrary>], iteration_bounds = array<i64: 1>, scalar_prefetch = 0 : i64, scratch_operands = 0 : i64, tpu.core_type = #tpu.core_type<tc>, window_params = [{pipeline_mode = #tpu.pipeline_mode<synchronous>, transform_indices = @transform_0, window_bounds = array<i64: 2, 768>}, {pipeline_mode = #tpu.pipeline_mode<synchronous>, transform_indices = @transform_1, window_bounds = array<i64: 768, 3>}, {pipeline_mode = #tpu.pipeline_mode<synchronous>, transform_indices = @transform_2, window_bounds = array<i64: 3, 32>}, {pipeline_mode = #tpu.pipeline_mode<synchronous>, transform_indices = @transform_3, window_bounds = array<i64: 1, 32>}, {pipeline_mode = #tpu.pipeline_mode<synchronous>, transform_indices = @transform_4, window_bounds = array<i64: 3, 32>}, {pipeline_mode = #tpu.pipeline_mode<synchronous>, transform_indices = @transform_5, window_bounds = array<i64: 1, 32>}, {pipeline_mode = #tpu.pipeline_mode<synchronous>, transform_indices = @transform_6, window_bounds = array<i64: 32, 768>}, {pipeline_mode = #tpu.pipeline_mode<synchronous>, transform_indices = @transform_7, window_bounds = array<i64: 1, 768>}, {pipeline_mode = #tpu.pipeline_mode<synchronous>, transform_indices = @transform_8, window_bounds = array<i64: 32, 1024>}, {pipeline_mode = #tpu.pipeline_mode<synchronous>, transform_indices = @transform_9, window_bounds = array<i64: 1, 1024>}, {pipeline_mode = #tpu.pipeline_mode<synchronous>, transform_indices = @transform_10, window_bounds = array<i64: 2, 768>}, {pipeline_mode = #tpu.pipeline_mode<synchronous>, transform_indices = @transform_11, window_bounds = array<i64: 2, 256>}, {pipeline_mode = #tpu.pipeline_mode<synchronous>, transform_indices = @transform_12, window_bounds = array<i64: 2, 384>}]} {
    %c0 = arith.constant 0 : index
    %c0_0 = arith.constant 0 : index
    %0 = vector.load %arg1[%c0, %c0_0] : memref<2x768xf32, #tpu.memory_space<vmem>>, vector<2x768xf32>
    %c0_1 = arith.constant 0 : index
    %c0_2 = arith.constant 0 : index
    %1 = vector.load %arg2[%c0_1, %c0_2] : memref<768x3xf32, #tpu.memory_space<vmem>>, vector<768x3xf32>
    %cst = arith.constant dense<0.000000e+00> : vector<2x3xf32>
    %2 = tpu.matmul %0, %1, %cst {dimension_numbers = #tpu.dot_dimension_numbers<[1], [0], [0], [1], [0, 0, 1, 1], [], []>} : vector<2x768xf32>, vector<768x3xf32>, vector<2x3xf32> -> vector<2x3xf32>
    %c0_3 = arith.constant 0 : index
    %c0_4 = arith.constant 0 : index
    %3 = vector.load %arg3[%c0_3, %c0_4] : memref<3x32xf32, #tpu.memory_space<vmem>>, vector<3x32xf32>
    %cst_5 = arith.constant dense<0.000000e+00> : vector<2x32xf32>
    %4 = tpu.matmul %2, %3, %cst_5 {dimension_numbers = #tpu.dot_dimension_numbers<[1], [0], [0], [1], [0, 0, 1, 1], [], []>} : vector<2x3xf32>, vector<3x32xf32>, vector<2x32xf32> -> vector<2x32xf32>
    %c0_6 = arith.constant 0 : index
    %c0_7 = arith.constant 0 : index
    %5 = vector.load %arg4[%c0_6, %c0_7] : memref<1x32xf32, #tpu.memory_space<vmem>>, vector<1x32xf32>
    %6 = vector.broadcast %5 : vector<1x32xf32> to vector<2x32xf32>
    %7 = arith.addf %4, %6 : vector<2x32xf32>
    %8 = math.tanh %7 : vector<2x32xf32>
    %c0_8 = arith.constant 0 : index
    %c0_9 = arith.constant 0 : index
    %9 = vector.load %arg5[%c0_8, %c0_9] : memref<3x32xf32, #tpu.memory_space<vmem>>, vector<3x32xf32>
    %cst_10 = arith.constant dense<0.000000e+00> : vector<2x32xf32>
    %10 = tpu.matmul %2, %9, %cst_10 {dimension_numbers = #tpu.dot_dimension_numbers<[1], [0], [0], [1], [0, 0, 1, 1], [], []>} : vector<2x3xf32>, vector<3x32xf32>, vector<2x32xf32> -> vector<2x32xf32>
    %c0_11 = arith.constant 0 : index
    %c0_12 = arith.constant 0 : index
    %11 = vector.load %arg6[%c0_11, %c0_12] : memref<1x32xf32, #tpu.memory_space<vmem>>, vector<1x32xf32>
    %12 = vector.broadcast %11 : vector<1x32xf32> to vector<2x32xf32>
    %13 = arith.addf %10, %12 : vector<2x32xf32>
    %14 = math.tanh %13 : vector<2x32xf32>
    %c0_13 = arith.constant 0 : index
    %c0_14 = arith.constant 0 : index
    %15 = vector.load %arg7[%c0_13, %c0_14] : memref<32x768xf32, #tpu.memory_space<vmem>>, vector<32x768xf32>
    %cst_15 = arith.constant dense<0.000000e+00> : vector<2x768xf32>
    %16 = tpu.matmul %8, %15, %cst_15 {dimension_numbers = #tpu.dot_dimension_numbers<[1], [0], [0], [1], [0, 0, 1, 1], [], []>} : vector<2x32xf32>, vector<32x768xf32>, vector<2x768xf32> -> vector<2x768xf32>
    %c0_16 = arith.constant 0 : index
    %c0_17 = arith.constant 0 : index
    %17 = vector.load %arg8[%c0_16, %c0_17] : memref<1x768xf32, #tpu.memory_space<vmem>>, vector<1x768xf32>
    %18 = vector.broadcast %17 : vector<1x768xf32> to vector<2x768xf32>
    %19 = arith.addf %16, %18 : vector<2x768xf32>
    %c0_18 = arith.constant 0 : index
    %c0_19 = arith.constant 0 : index
    %20 = vector.load %arg9[%c0_18, %c0_19] : memref<32x1024xf32, #tpu.memory_space<vmem>>, vector<32x1024xf32>
    %cst_20 = arith.constant dense<0.000000e+00> : vector<2x1024xf32>
    %21 = tpu.matmul %14, %20, %cst_20 {dimension_numbers = #tpu.dot_dimension_numbers<[1], [0], [0], [1], [0, 0, 1, 1], [], []>} : vector<2x32xf32>, vector<32x1024xf32>, vector<2x1024xf32> -> vector<2x1024xf32>
    %c0_21 = arith.constant 0 : index
    %c0_22 = arith.constant 0 : index
    %22 = vector.load %arg10[%c0_21, %c0_22] : memref<1x1024xf32, #tpu.memory_space<vmem>>, vector<1x1024xf32>
    %23 = vector.broadcast %22 : vector<1x1024xf32> to vector<2x1024xf32>
    %24 = arith.addf %21, %23 : vector<2x1024xf32>
    %25 = vector.extract_strided_slice %24 {offsets = [0, 0], sizes = [2, 768], strides = [1, 1]} : vector<2x1024xf32> to vector<2x768xf32>
    %26 = vector.extract_strided_slice %24 {offsets = [0, 768], sizes = [2, 256], strides = [1, 1]} : vector<2x1024xf32> to vector<2x256xf32>
    %27 = arith.negf %25 : vector<2x768xf32>
    %28 = math.exp %27 : vector<2x768xf32>
    %cst_23 = arith.constant 1.000000e+00 : f32
    %29 = vector.broadcast %cst_23 : f32 to vector<2x768xf32>
    %30 = arith.addf %29, %28 : vector<2x768xf32>
    %31 = arith.divf %29, %30 : vector<2x768xf32>
    %32 = arith.negf %19 : vector<2x768xf32>
    %33 = math.exp %32 : vector<2x768xf32>
    %cst_24 = arith.constant 1.000000e+00 : f32
    %34 = vector.broadcast %cst_24 : f32 to vector<2x768xf32>
    %35 = arith.addf %34, %33 : vector<2x768xf32>
    %36 = arith.divf %34, %35 : vector<2x768xf32>
    %37 = arith.negf %26 : vector<2x256xf32>
    %38 = math.exp %37 : vector<2x256xf32>
    %cst_25 = arith.constant 1.000000e+00 : f32
    %39 = vector.broadcast %cst_25 : f32 to vector<2x256xf32>
    %40 = arith.addf %39, %38 : vector<2x256xf32>
    %41 = arith.divf %39, %40 : vector<2x256xf32>
    %cst_26 = arith.constant 9.99999974E-6 : f32
    %42 = vector.broadcast %cst_26 : f32 to vector<2x256xf32>
    %43 = arith.addf %41, %42 : vector<2x256xf32>
    %44 = math.log %43 : vector<2x256xf32>
    %cst_27 = arith.constant 1.000000e+00 : f32
    %45 = vector.broadcast %cst_27 : f32 to vector<2x256xf32>
    %46 = arith.subf %45, %41 : vector<2x256xf32>
    %cst_28 = arith.constant 9.99999974E-6 : f32
    %47 = vector.broadcast %cst_28 : f32 to vector<2x256xf32>
    %48 = arith.addf %46, %47 : vector<2x256xf32>
    %49 = math.log %48 : vector<2x256xf32>
    %50 = tpu.concatenate %41, %41, %41 in 1 : vector<2x256xf32>, vector<2x256xf32>, vector<2x256xf32> -> vector<2x768xf32>
    %51 = arith.subf %0, %31 : vector<2x768xf32>
    %52 = arith.mulf %51, %51 : vector<2x768xf32>
    %cst_29 = arith.constant 22.2222214 : f32
    %53 = vector.broadcast %cst_29 : f32 to vector<2x768xf32>
    %54 = arith.mulf %52, %53 : vector<2x768xf32>
    %cst_30 = arith.constant 0.978181481 : f32
    %55 = vector.broadcast %cst_30 : f32 to vector<2x768xf32>
    %56 = arith.subf %55, %54 : vector<2x768xf32>
    %57 = tpu.concatenate %44, %44, %44 in 1 : vector<2x256xf32>, vector<2x256xf32>, vector<2x256xf32> -> vector<2x768xf32>
    %58 = arith.addf %56, %57 : vector<2x768xf32>
    %59 = arith.subf %0, %36 : vector<2x768xf32>
    %60 = arith.mulf %59, %59 : vector<2x768xf32>
    %cst_31 = arith.constant 22.2222214 : f32
    %61 = vector.broadcast %cst_31 : f32 to vector<2x768xf32>
    %62 = arith.mulf %60, %61 : vector<2x768xf32>
    %cst_32 = arith.constant 0.978181481 : f32
    %63 = vector.broadcast %cst_32 : f32 to vector<2x768xf32>
    %64 = arith.subf %63, %62 : vector<2x768xf32>
    %65 = tpu.concatenate %49, %49, %49 in 1 : vector<2x256xf32>, vector<2x256xf32>, vector<2x256xf32> -> vector<2x768xf32>
    %66 = arith.addf %64, %65 : vector<2x768xf32>
    %67 = arith.maximumf %58, %66 : vector<2x768xf32>
    %68 = arith.subf %58, %66 : vector<2x768xf32>
    %69 = math.absf %68 : vector<2x768xf32>
    %cst_33 = arith.constant 0.000000e+00 : f32
    %70 = vector.broadcast %cst_33 : f32 to vector<2x768xf32>
    %71 = arith.subf %70, %69 : vector<2x768xf32>
    %72 = math.exp %71 : vector<2x768xf32>
    %cst_34 = arith.constant 1.000000e+00 : f32
    %73 = vector.broadcast %cst_34 : f32 to vector<2x768xf32>
    %74 = arith.addf %73, %72 : vector<2x768xf32>
    %75 = math.log %74 : vector<2x768xf32>
    %76 = arith.addf %67, %75 : vector<2x768xf32>
    %cst_35 = arith.constant dense<0.000000e+00> : vector<2xf32>
    %77 = vector.multi_reduction <add>, %76, %cst_35 [1] : vector<2x768xf32> to vector<2xf32>
    %78 = vector.shape_cast %77 : vector<2xf32> to vector<2x1xf32>
    %79 = arith.subf %31, %36 : vector<2x768xf32>
    %80 = arith.mulf %50, %79 : vector<2x768xf32>
    %81 = arith.addf %36, %80 : vector<2x768xf32>
    %82 = arith.subf %81, %0 : vector<2x768xf32>
    %83 = arith.mulf %82, %82 : vector<2x768xf32>
    %cst_36 = arith.constant dense<0.000000e+00> : vector<2xf32>
    %84 = vector.multi_reduction <add>, %83, %cst_36 [1] : vector<2x768xf32> to vector<2xf32>
    %85 = vector.shape_cast %84 : vector<2xf32> to vector<2x1xf32>
    %86 = arith.mulf %14, %14 : vector<2x32xf32>
    %cst_37 = arith.constant dense<0.000000e+00> : vector<2xf32>
    %87 = vector.multi_reduction <add>, %86, %cst_37 [1] : vector<2x32xf32> to vector<2xf32>
    %88 = vector.shape_cast %87 : vector<2xf32> to vector<2x1xf32>
    %cst_38 = arith.constant 5.000000e-01 : f32
    %89 = vector.broadcast %cst_38 : f32 to vector<2x1xf32>
    %90 = arith.mulf %89, %88 : vector<2x1xf32>
    %91 = arith.mulf %8, %8 : vector<2x32xf32>
    %cst_39 = arith.constant dense<0.000000e+00> : vector<2xf32>
    %92 = vector.multi_reduction <add>, %91, %cst_39 [1] : vector<2x32xf32> to vector<2xf32>
    %93 = vector.shape_cast %92 : vector<2xf32> to vector<2x1xf32>
    %cst_40 = arith.constant 5.000000e-01 : f32
    %94 = vector.broadcast %cst_40 : f32 to vector<2x1xf32>
    %95 = arith.mulf %94, %93 : vector<2x1xf32>
    %96 = arith.subf %78, %95 : vector<2x1xf32>
    %97 = arith.subf %96, %90 : vector<2x1xf32>
    %c0_41 = arith.constant 0 : index
    %c0_42 = arith.constant 0 : index
    %98 = vector.load %arg11[%c0_41, %c0_42] : memref<2x768xf32, #tpu.memory_space<vmem>>, vector<2x768xf32>
    tpu.vector_store %arg11[%c0_41, %c0_42], %81 {strides = array<i32>} : memref<2x768xf32, #tpu.memory_space<vmem>>, vector<2x768xf32>,
    %c0_43 = arith.constant 0 : index
    %c0_44 = arith.constant 0 : index
    %99 = vector.load %arg12[%c0_43, %c0_44] : memref<2x256xf32, #tpu.memory_space<vmem>>, vector<2x256xf32>
    tpu.vector_store %arg12[%c0_43, %c0_44], %41 {strides = array<i32>} : memref<2x256xf32, #tpu.memory_space<vmem>>, vector<2x256xf32>,
    %100 = vector.shape_cast %78 : vector<2x1xf32> to vector<2x1xf32>
    %101 = vector.broadcast %100 : vector<2x1xf32> to vector<2x128xf32>
    %102 = vector.shape_cast %85 : vector<2x1xf32> to vector<2x1xf32>
    %103 = vector.broadcast %102 : vector<2x1xf32> to vector<2x128xf32>
    %104 = vector.shape_cast %97 : vector<2x1xf32> to vector<2x1xf32>
    %105 = vector.broadcast %104 : vector<2x1xf32> to vector<2x128xf32>
    %106 = tpu.concatenate %101, %103, %105 in 1 : vector<2x128xf32>, vector<2x128xf32>, vector<2x128xf32> -> vector<2x384xf32>
    %c0_45 = arith.constant 0 : index
    %c0_46 = arith.constant 0 : index
    %107 = vector.load %arg13[%c0_45, %c0_46] : memref<2x384xf32, #tpu.memory_space<vmem>>, vector<2x384xf32>
    tpu.vector_store %arg13[%c0_45, %c0_46], %106 {strides = array<i32>} : memref<2x384xf32, #tpu.memory_space<vmem>>, vector<2x384xf32>,
    return
  }
  func.func @transform_0(%arg0: i32) -> (i32, i32) {
    %c0_i32 = arith.constant 0 : i32
    %c0_i32_0 = arith.constant 0 : i32
    %c0_i32_1 = arith.constant 0 : i32
    return %c0_i32, %c0_i32_0 : i32, i32
  }
  func.func @transform_1(%arg0: i32) -> (i32, i32) {
    %c0_i32 = arith.constant 0 : i32
    %c0_i32_0 = arith.constant 0 : i32
    %c0_i32_1 = arith.constant 0 : i32
    return %c0_i32, %c0_i32_0 : i32, i32
  }
  func.func @transform_2(%arg0: i32) -> (i32, i32) {
    %c0_i32 = arith.constant 0 : i32
    %c0_i32_0 = arith.constant 0 : i32
    %c0_i32_1 = arith.constant 0 : i32
    return %c0_i32, %c0_i32_0 : i32, i32
  }
  func.func @transform_3(%arg0: i32) -> (i32, i32) {
    %c0_i32 = arith.constant 0 : i32
    %c0_i32_0 = arith.constant 0 : i32
    %c0_i32_1 = arith.constant 0 : i32
    return %c0_i32, %c0_i32_0 : i32, i32
  }
  func.func @transform_4(%arg0: i32) -> (i32, i32) {
    %c0_i32 = arith.constant 0 : i32
    %c0_i32_0 = arith.constant 0 : i32
    %c0_i32_1 = arith.constant 0 : i32
    return %c0_i32, %c0_i32_0 : i32, i32
  }
  func.func @transform_5(%arg0: i32) -> (i32, i32) {
    %c0_i32 = arith.constant 0 : i32
    %c0_i32_0 = arith.constant 0 : i32
    %c0_i32_1 = arith.constant 0 : i32
    return %c0_i32, %c0_i32_0 : i32, i32
  }
  func.func @transform_6(%arg0: i32) -> (i32, i32) {
    %c0_i32 = arith.constant 0 : i32
    %c0_i32_0 = arith.constant 0 : i32
    %c0_i32_1 = arith.constant 0 : i32
    return %c0_i32, %c0_i32_0 : i32, i32
  }
  func.func @transform_7(%arg0: i32) -> (i32, i32) {
    %c0_i32 = arith.constant 0 : i32
    %c0_i32_0 = arith.constant 0 : i32
    %c0_i32_1 = arith.constant 0 : i32
    return %c0_i32, %c0_i32_0 : i32, i32
  }
  func.func @transform_8(%arg0: i32) -> (i32, i32) {
    %c0_i32 = arith.constant 0 : i32
    %c0_i32_0 = arith.constant 0 : i32
    %c0_i32_1 = arith.constant 0 : i32
    return %c0_i32, %c0_i32_0 : i32, i32
  }
  func.func @transform_9(%arg0: i32) -> (i32, i32) {
    %c0_i32 = arith.constant 0 : i32
    %c0_i32_0 = arith.constant 0 : i32
    %c0_i32_1 = arith.constant 0 : i32
    return %c0_i32, %c0_i32_0 : i32, i32
  }
  func.func @transform_10(%arg0: i32) -> (i32, i32) {
    %c0_i32 = arith.constant 0 : i32
    %c0_i32_0 = arith.constant 0 : i32
    %c0_i32_1 = arith.constant 0 : i32
    return %c0_i32, %c0_i32_0 : i32, i32
  }
  func.func @transform_11(%arg0: i32) -> (i32, i32) {
    %c0_i32 = arith.constant 0 : i32
    %c0_i32_0 = arith.constant 0 : i32
    %c0_i32_1 = arith.constant 0 : i32
    return %c0_i32, %c0_i32_0 : i32, i32
  }
  func.func @transform_12(%arg0: i32) -> (i32, i32) {
    %c0_i32 = arith.constant 0 : i32
    %c0_i32_0 = arith.constant 0 : i32
    %c0_i32_1 = arith.constant 0 : i32
    return %c0_i32, %c0_i32_0 : i32, i32
  }
}

</mosaic_0001>

<llo_original>
// kernel: tpu_custom_call.1
$region0: #{tpu_custom_call.1}
  #allocation0 [shape = 'u32[]', space=smem, size = 0x4, offset = 0x4, fixed_abs, tag = 'smem constant byte address 0x4 - core index']
  #allocation1 [shape = 'u32[144,128]{1,0:T(1,128)}', space=vmem, size = 0x12000, scoped, tag = 'internal scratch']
  %s0 = inlined_call_operand.vmem [shape: f32[2,768], index: 0, kind: input, shape index: {}]
  %s1 = inlined_call_operand.vmem [shape: f32[768,3], index: 1, kind: input, shape index: {}]
  %s2 = inlined_call_operand.vmem [shape: f32[3,32], index: 2, kind: input, shape index: {}]
  %s3 = inlined_call_operand.vmem [shape: f32[1,32], index: 3, kind: input, shape index: {}]
  %s4 = inlined_call_operand.vmem [shape: f32[3,32], index: 4, kind: input, shape index: {}]
  %s5 = inlined_call_operand.vmem [shape: f32[1,32], index: 5, kind: input, shape index: {}]
  %s6 = inlined_call_operand.vmem [shape: f32[32,768], index: 6, kind: input, shape index: {}]
  %s7 = inlined_call_operand.vmem [shape: f32[1,768], index: 7, kind: input, shape index: {}]
  %s8 = inlined_call_operand.vmem [shape: f32[32,1024], index: 8, kind: input, shape index: {}]
  %s9 = inlined_call_operand.vmem [shape: f32[1,1024], index: 9, kind: input, shape index: {}]
  %s10 = inlined_call_operand.hbm [shape: f32[2,768], index: 10, kind: output, shape index: {0}]
  %s11 = inlined_call_operand.hbm [shape: f32[2,256], index: 11, kind: output, shape index: {1}]
  %s12 = inlined_call_operand.hbm [shape: f32[2,384], index: 12, kind: output, shape index: {2}]
  %13 = xla_tuple %s10, %s11, %s12
  %s14 = sld [smem:[#allocation0]]
  $region66: #{tpu_custom_call.1} parent=0
    _
  %s16 = ssub.s32 1, %s14
  %s17 = scalar_select 0, %s16, %s14
  $region1: #{tpu_custom_call.1} parent=0
    #allocation2 [shape = 'u8[6144]{0}', space=vmem, size = 0x1800, scoped, tag = 'output window, operand 0, single buffered']
    #allocation3 [shape = 's32[1]{0}', space=sflag, size = 0x4, scoped, tag = 'scoped memory for tpu_custom_call.1']
    #allocation4 [shape = 'u8[2048]{0}', space=vmem, size = 0x800, scoped, tag = 'output window, operand 1, single buffered']
    #allocation5 [shape = 's32[1]{0}', space=sflag, size = 0x4, scoped, tag = 'scoped memory for tpu_custom_call.1']
    #allocation6 [shape = 'u8[3072]{0}', space=vmem, size = 0xc00, scoped, tag = 'output window, operand 2, single buffered']
    %18 = vsyncpa [#allocation3], 0
    %19 = vsyncpa [#allocation5], 0
    // Predicated region
    $region2: #{tpu_custom_call.1} parent=1 // pred_check
      _
    $region3: #{tpu_custom_call.1} parent=1 // pred_check_branch
      %21 = sbr.rel (0) target = $region5
    $region4: #{tpu_custom_call.1} parent=1 // pred_region
      _
    $region5: #{tpu_custom_call.1} parent=1 // pred_fallthru
      _
    // Predicated region
    $region6: #{tpu_custom_call.1} parent=1 // pred_check
      _
    $region7: #{tpu_custom_call.1} parent=1 // pred_check_branch
      %23 = sbr.rel (0) target = $region9
    $region8: #{tpu_custom_call.1} parent=1 // pred_region
      _
    $region9: #{tpu_custom_call.1} parent=1 // pred_fallthru
      _
    // Predicated region
    $region10: #{tpu_custom_call.1} parent=1 // pred_check
      _
    $region11: #{tpu_custom_call.1} parent=1 // pred_check_branch
      %25 = sbr.rel (0) target = $region13
    $region12: #{tpu_custom_call.1} parent=1 // pred_region
      _
    $region13: #{tpu_custom_call.1} parent=1 // pred_fallthru
      _
    // Predicated region
    $region14: #{tpu_custom_call.1} parent=1 // pred_check
      _
    $region15: #{tpu_custom_call.1} parent=1 // pred_check_branch
      %27 = sbr.rel (0) target = $region17
    $region16: #{tpu_custom_call.1} parent=1 // pred_region
      _
    $region17: #{tpu_custom_call.1} parent=1 // pred_fallthru
      _
    // Predicated region
    $region18: #{tpu_custom_call.1} parent=1 // pred_check
      _
    $region19: #{tpu_custom_call.1} parent=1 // pred_check_branch
      %29 = sbr.rel (0) target = $region21
    $region20: #{tpu_custom_call.1} parent=1 // pred_region
      _
    $region21: #{tpu_custom_call.1} parent=1 // pred_fallthru
      _
    // Predicated region
    $region22: #{tpu_custom_call.1} parent=1 // pred_check
      _
    $region23: #{tpu_custom_call.1} parent=1 // pred_check_branch
      %31 = sbr.rel (0) target = $region25
    $region24: #{tpu_custom_call.1} parent=1 // pred_region
      _
    $region25: #{tpu_custom_call.1} parent=1 // pred_fallthru
      _
    // Predicated region
    $region26: #{tpu_custom_call.1} parent=1 // pred_check
      _
    $region27: #{tpu_custom_call.1} parent=1 // pred_check_branch
      %33 = sbr.rel (0) target = $region29
    $region28: #{tpu_custom_call.1} parent=1 // pred_region
      _
    $region29: #{tpu_custom_call.1} parent=1 // pred_fallthru
      _
    // Predicated region
    $region30: #{tpu_custom_call.1} parent=1 // pred_check
      _
    $region31: #{tpu_custom_call.1} parent=1 // pred_check_branch
      %35 = sbr.rel (0) target = $region33
    $region32: #{tpu_custom_call.1} parent=1 // pred_region
      _
    $region33: #{tpu_custom_call.1} parent=1 // pred_fallthru
      _
    // Predicated region
    $region34: #{tpu_custom_call.1} parent=1 // pred_check
      _
    $region35: #{tpu_custom_call.1} parent=1 // pred_check_branch
      %37 = sbr.rel (0) target = $region37
    $region36: #{tpu_custom_call.1} parent=1 // pred_region
      _
    $region37: #{tpu_custom_call.1} parent=1 // pred_fallthru
      _
    // Predicated region
    $region38: #{tpu_custom_call.1} parent=1 // pred_check
      _
    $region39: #{tpu_custom_call.1} parent=1 // pred_check_branch
      %39 = sbr.rel (0) target = $region41
    $region40: #{tpu_custom_call.1} parent=1 // pred_region
      _
    $region41: #{tpu_custom_call.1} parent=1 // pred_fallthru
      _
    %v40 = vld [vmem:[%s0] sm:$0xff]
    %v41 = vld [vmem:[%s0 + $0x8] sm:$0xf]
    %v42 = vld [vmem:[%s1] sm:$0xff]
    %v43 = vld [vmem:[%s1 + $0x8] sm:$0xff]
    %v44 = vld [vmem:[%s1 + $0x10] sm:$0xff]
    %v45 = vld [vmem:[%s1 + $0x18] sm:$0xff]
    %v46 = vld [vmem:[%s1 + $0x20] sm:$0xff]
    %v47 = vld [vmem:[%s1 + $0x28] sm:$0xff]
    %v48 = vld [vmem:[%s1 + $0x30] sm:$0xff]
    %v49 = vld [vmem:[%s1 + $0x38] sm:$0xff]
    %v50 = vld [vmem:[%s1 + $0x40] sm:$0xff]
    %v51 = vld [vmem:[%s1 + $0x48] sm:$0xff]
    %v52 = vld [vmem:[%s1 + $0x50] sm:$0xff]
    %v53 = vld [vmem:[%s1 + $0x58] sm:$0xff]
    %v54 = vld [vmem:[%s1 + $0x60] sm:$0xff]
    %v55 = vld [vmem:[%s1 + $0x68] sm:$0xff]
    %v56 = vld [vmem:[%s1 + $0x70] sm:$0xff]
    %v57 = vld [vmem:[%s1 + $0x78] sm:$0xff]
    %v58 = vld [vmem:[%s1 + $0x80] sm:$0xff]
    %v59 = vld [vmem:[%s1 + $0x88] sm:$0xff]
    %v60 = vld [vmem:[%s1 + $0x90] sm:$0xff]
    %v61 = vld [vmem:[%s1 + $0x98] sm:$0xff]
    %v62 = vld [vmem:[%s1 + $0xa0] sm:$0xff]
    %v63 = vld [vmem:[%s1 + $0xa8] sm:$0xff]
    %v64 = vld [vmem:[%s1 + $0xb0] sm:$0xff]
    %v65 = vld [vmem:[%s1 + $0xb8] sm:$0xff]
    %v66 = vld [vmem:[%s1 + $0xc0] sm:$0xff]
    %v67 = vld [vmem:[%s1 + $0xc8] sm:$0xff]
    %v68 = vld [vmem:[%s1 + $0xd0] sm:$0xff]
    %v69 = vld [vmem:[%s1 + $0xd8] sm:$0xff]
    %v70 = vld [vmem:[%s1 + $0xe0] sm:$0xff]
    %v71 = vld [vmem:[%s1 + $0xe8] sm:$0xff]
    %v72 = vld [vmem:[%s1 + $0xf0] sm:$0xff]
    %v73 = vld [vmem:[%s1 + $0xf8] sm:$0xff]
    %v74 = vld [vmem:[%s1 + $0x100] sm:$0xff]
    %v75 = vld [vmem:[%s1 + $0x108] sm:$0xff]
    %v76 = vld [vmem:[%s1 + $0x110] sm:$0xff]
    %v77 = vld [vmem:[%s1 + $0x118] sm:$0xff]
    %v78 = vld [vmem:[%s1 + $0x120] sm:$0xff]
    %v79 = vld [vmem:[%s1 + $0x128] sm:$0xff]
    %v80 = vld [vmem:[%s1 + $0x130] sm:$0xff]
    %v81 = vld [vmem:[%s1 + $0x138] sm:$0xff]
    %v82 = vld [vmem:[%s1 + $0x140] sm:$0xff]
    %v83 = vld [vmem:[%s1 + $0x148] sm:$0xff]
    %v84 = vld [vmem:[%s1 + $0x150] sm:$0xff]
    %v85 = vld [vmem:[%s1 + $0x158] sm:$0xff]
    %v86 = vld [vmem:[%s1 + $0x160] sm:$0xff]
    %v87 = vld [vmem:[%s1 + $0x168] sm:$0xff]
    %v88 = vld [vmem:[%s1 + $0x170] sm:$0xff]
    %v89 = vld [vmem:[%s1 + $0x178] sm:$0xff]
    %v90 = vld [vmem:[%s1 + $0x180] sm:$0xff]
    %v91 = vld [vmem:[%s1 + $0x188] sm:$0xff]
    %v92 = vld [vmem:[%s1 + $0x190] sm:$0xff]
    %v93 = vld [vmem:[%s1 + $0x198] sm:$0xff]
    %v94 = vld [vmem:[%s1 + $0x1a0] sm:$0xff]
    %v95 = vld [vmem:[%s1 + $0x1a8] sm:$0xff]
    %v96 = vld [vmem:[%s1 + $0x1b0] sm:$0xff]
    %v97 = vld [vmem:[%s1 + $0x1b8] sm:$0xff]
    %v98 = vld [vmem:[%s1 + $0x1c0] sm:$0xff]
    %v99 = vld [vmem:[%s1 + $0x1c8] sm:$0xff]
    %v100 = vld [vmem:[%s1 + $0x1d0] sm:$0xff]
    %v101 = vld [vmem:[%s1 + $0x1d8] sm:$0xff]
    %v102 = vld [vmem:[%s1 + $0x1e0] sm:$0xff]
    %v103 = vld [vmem:[%s1 + $0x1e8] sm:$0xff]
    %v104 = vld [vmem:[%s1 + $0x1f0] sm:$0xff]
    %v105 = vld [vmem:[%s1 + $0x1f8] sm:$0xff]
    %v106 = vld [vmem:[%s1 + $0x200] sm:$0xff]
    %v107 = vld [vmem:[%s1 + $0x208] sm:$0xff]
    %v108 = vld [vmem:[%s1 + $0x210] sm:$0xff]
    %v109 = vld [vmem:[%s1 + $0x218] sm:$0xff]
    %v110 = vld [vmem:[%s1 + $0x220] sm:$0xff]
    %v111 = vld [vmem:[%s1 + $0x228] sm:$0xff]
    %v112 = vld [vmem:[%s1 + $0x230] sm:$0xff]
    %v113 = vld [vmem:[%s1 + $0x238] sm:$0xff]
    %v114 = vld [vmem:[%s1 + $0x240] sm:$0xff]
    %v115 = vld [vmem:[%s1 + $0x248] sm:$0xff]
    %v116 = vld [vmem:[%s1 + $0x250] sm:$0xff]
    %v117 = vld [vmem:[%s1 + $0x258] sm:$0xff]
    %v118 = vld [vmem:[%s1 + $0x260] sm:$0xff]
    %v119 = vld [vmem:[%s1 + $0x268] sm:$0xff]
    %v120 = vld [vmem:[%s1 + $0x270] sm:$0xff]
    %v121 = vld [vmem:[%s1 + $0x278] sm:$0xff]
    %v122 = vld [vmem:[%s1 + $0x280] sm:$0xff]
    %v123 = vld [vmem:[%s1 + $0x288] sm:$0xff]
    %v124 = vld [vmem:[%s1 + $0x290] sm:$0xff]
    %v125 = vld [vmem:[%s1 + $0x298] sm:$0xff]
    %v126 = vld [vmem:[%s1 + $0x2a0] sm:$0xff]
    %v127 = vld [vmem:[%s1 + $0x2a8] sm:$0xff]
    %v128 = vld [vmem:[%s1 + $0x2b0] sm:$0xff]
    %v129 = vld [vmem:[%s1 + $0x2b8] sm:$0xff]
    %v130 = vld [vmem:[%s1 + $0x2c0] sm:$0xff]
    %v131 = vld [vmem:[%s1 + $0x2c8] sm:$0xff]
    %v132 = vld [vmem:[%s1 + $0x2d0] sm:$0xff]
    %v133 = vld [vmem:[%s1 + $0x2d8] sm:$0xff]
    %v134 = vld [vmem:[%s1 + $0x2e0] sm:$0xff]
    %v135 = vld [vmem:[%s1 + $0x2e8] sm:$0xff]
    %v136 = vld [vmem:[%s1 + $0x2f0] sm:$0xff]
    %v137 = vld [vmem:[%s1 + $0x2f8] sm:$0xff]
    %v140 = vcombine.high %v40, %v40
    %v142 = vunpack.c.l.s4 1983009808
    %v143 = vunpack.c.0.s8 %v142
    %v144 = vlaneseq
    %v145 = vshrl.u32 %v144, 7
    %v146 = vsub.s32 %v143, %v145
    %v147 = vrot.slane %v40, %v146
    %v149 = vunpack.c.l.s4 1983009808
    %v150 = vunpack.c.0.s8 %v149
    %v151 = vlaneseq
    %v152 = vshrl.u32 %v151, 7
    %v153 = vsub.s32 %v150, %v152
    %v154 = vrot.slane %v140, %v153
    %v155 = vcombine.high %v147, %v147
    %v156 = vcombine.high %v154, %v154
    %v158 = vunpack.c.l.s4 1983009808
    %v159 = vunpack.c.0.s8 %v158
    %v160 = vlaneseq
    %v161 = vshrl.u32 %v160, 7
    %v162 = vsub.s32 %v159, %v161
    %v163 = vrot.slane %v41, %v162
    %v164 = vcombine.high %v163, %v163
    %171 = vmatprep.subr.mxu0 0.0
    %172 = vmatpush1.msra.mxu0 %v42
    %173 = vmatprep.subr.mxu0 0.0
    %174 = vmatpush1.msra.mxu0 %v43
    %175 = vmatprep.subr.mxu0 0.0
    %176 = vmatpush1.msra.mxu0 %v44
    %177 = vmatprep.subr.mxu0 0.0
    %178 = vmatpush1.msra.mxu0 %v45
    %179 = vmatprep.subr.mxu0 0.0
    %180 = vmatpush1.msra.mxu0 %v46
    %181 = vmatprep.subr.mxu0 0.0
    %182 = vmatpush1.msra.mxu0 %v47
    %183 = vmatprep.subr.mxu0 0.0
    %184 = vmatpush1.msra.mxu0 %v48
    %185 = vmatprep.subr.mxu0 0.0
    %186 = vmatpush1.msra.mxu0 %v49
    %187 = vmatprep.subr.mxu0 0.0
    %188 = vmatpush1.msra.mxu0 %v50
    %189 = vmatprep.subr.mxu0 0.0
    %190 = vmatpush1.msra.mxu0 %v51
    %191 = vmatprep.subr.mxu0 0.0
    %192 = vmatpush1.msra.mxu0 %v52
    %193 = vmatprep.subr.mxu0 0.0
    %194 = vmatpush1.msra.mxu0 %v53
    %195 = vmatprep.subr.mxu0 0.0
    %196 = vmatpush1.msra.mxu0 %v54
    %197 = vmatprep.subr.mxu0 0.0
    %198 = vmatpush1.msra.mxu0 %v55
    %199 = vmatprep.subr.mxu0 0.0
    %200 = vmatpush1.msra.mxu0 %v56
    %201 = vmatprep.subr.mxu0 0.0
    %202 = vmatpush1.msra.mxu0 %v57
    %203 = vmatprep.subr.mxu0 0.0
    %204 = vmatpush1.msra.mxu0 %v58
    %205 = vmatprep.subr.mxu0 0.0
    %206 = vmatpush1.msra.mxu0 %v59
    %207 = vmatprep.subr.mxu0 0.0
    %208 = vmatpush1.msra.mxu0 %v60
    %209 = vmatprep.subr.mxu0 0.0
    %210 = vmatpush1.msra.mxu0 %v61
    %211 = vmatprep.subr.mxu0 0.0
    %212 = vmatpush1.msra.mxu0 %v62
    %213 = vmatprep.subr.mxu0 0.0
    %214 = vmatpush1.msra.mxu0 %v63
    %215 = vmatprep.subr.mxu0 0.0
    %216 = vmatpush1.msra.mxu0 %v64
    %217 = vmatprep.subr.mxu0 0.0
    %218 = vmatpush1.msra.mxu0 %v65
    %219 = vmatprep.subr.mxu0 0.0
    %220 = vmatpush1.msra.mxu0 %v66
    %221 = vmatprep.subr.mxu0 0.0
    %222 = vmatpush1.msra.mxu0 %v67
    %223 = vmatprep.subr.mxu0 0.0
    %224 = vmatpush1.msra.mxu0 %v68
    %225 = vmatprep.subr.mxu0 0.0
    %226 = vmatpush1.msra.mxu0 %v69
    %227 = vmatprep.subr.mxu0 0.0
    %228 = vmatpush1.msra.mxu0 %v70
    %229 = vmatprep.subr.mxu0 0.0
    %230 = vmatpush1.msra.mxu0 %v71
    %231 = vmatprep.subr.mxu0 0.0
    %232 = vmatpush1.msra.mxu0 %v72
    %233 = vmatprep.subr.mxu0 0.0
    %234 = vmatpush1.msra.mxu0 %v73
    %235 = vmatprep.mubr.f32.mxu0 %v155
    %236 = vmatmul.mubr.f32.gmra.mrb[0].mxu0 %v147
    %v237 = vpop.f32.mrb[0].mxu0
    %v238 = vadd.f32 0.0, %v237
    %v239 = vpop.f32.mrb[0].mxu0
    %240 = vdwg.mxu0
    %241 = vmatprep.subr.mxu0 0.0
    %242 = vmatpush1.msra.mxu0 %v74
    %243 = vmatprep.subr.mxu0 0.0
    %244 = vmatpush1.msra.mxu0 %v75
    %245 = vmatprep.subr.mxu0 0.0
    %246 = vmatpush1.msra.mxu0 %v76
    %247 = vmatprep.subr.mxu0 0.0
    %248 = vmatpush1.msra.mxu0 %v77
    %249 = vmatprep.subr.mxu0 0.0
    %250 = vmatpush1.msra.mxu0 %v78
    %251 = vmatprep.subr.mxu0 0.0
    %252 = vmatpush1.msra.mxu0 %v79
    %253 = vmatprep.subr.mxu0 0.0
    %254 = vmatpush1.msra.mxu0 %v80
    %255 = vmatprep.subr.mxu0 0.0
    %256 = vmatpush1.msra.mxu0 %v81
    %257 = vmatprep.subr.mxu0 0.0
    %258 = vmatpush1.msra.mxu0 %v82
    %259 = vmatprep.subr.mxu0 0.0
    %260 = vmatpush1.msra.mxu0 %v83
    %261 = vmatprep.subr.mxu0 0.0
    %262 = vmatpush1.msra.mxu0 %v84
    %263 = vmatprep.subr.mxu0 0.0
    %264 = vmatpush1.msra.mxu0 %v85
    %265 = vmatprep.subr.mxu0 0.0
    %266 = vmatpush1.msra.mxu0 %v86
    %267 = vmatprep.subr.mxu0 0.0
    %268 = vmatpush1.msra.mxu0 %v87
    %269 = vmatprep.subr.mxu0 0.0
    %270 = vmatpush1.msra.mxu0 %v88
    %271 = vmatprep.subr.mxu0 0.0
    %272 = vmatpush1.msra.mxu0 %v89
    %273 = vmatprep.subr.mxu0 0.0
    %274 = vmatpush1.msra.mxu0 %v90
    %275 = vmatprep.subr.mxu0 0.0
    %276 = vmatpush1.msra.mxu0 %v91
    %277 = vmatprep.subr.mxu0 0.0
    %278 = vmatpush1.msra.mxu0 %v92
    %279 = vmatprep.subr.mxu0 0.0
    %280 = vmatpush1.msra.mxu0 %v93
    %281 = vmatprep.subr.mxu0 0.0
    %282 = vmatpush1.msra.mxu0 %v94
    %283 = vmatprep.subr.mxu0 0.0
    %284 = vmatpush1.msra.mxu0 %v95
    %285 = vmatprep.subr.mxu0 0.0
    %286 = vmatpush1.msra.mxu0 %v96
    %287 = vmatprep.subr.mxu0 0.0
    %288 = vmatpush1.msra.mxu0 %v97
    %289 = vmatprep.subr.mxu0 0.0
    %290 = vmatpush1.msra.mxu0 %v98
    %291 = vmatprep.subr.mxu0 0.0
    %292 = vmatpush1.msra.mxu0 %v99
    %293 = vmatprep.subr.mxu0 0.0
    %294 = vmatpush1.msra.mxu0 %v100
    %295 = vmatprep.subr.mxu0 0.0
    %296 = vmatpush1.msra.mxu0 %v101
    %297 = vmatprep.subr.mxu0 0.0
    %298 = vmatpush1.msra.mxu0 %v102
    %299 = vmatprep.subr.mxu0 0.0
    %300 = vmatpush1.msra.mxu0 %v103
    %301 = vmatprep.subr.mxu0 0.0
    %302 = vmatpush1.msra.mxu0 %v104
    %303 = vmatprep.subr.mxu0 0.0
    %304 = vmatpush1.msra.mxu0 %v105
    %305 = vmatprep.mubr.f32.mxu0 %v156
    %306 = vmatmul.mubr.f32.gmra.mrb[0].mxu0 %v154
    %v307 = vpop.f32.mrb[0].mxu0
    %v308 = vadd.f32 %v238, %v307
    %v309 = vpop.f32.mrb[0].mxu0
    %310 = vdwg.mxu0
    %311 = vmatprep.subr.mxu0 0.0
    %312 = vmatpush1.msra.mxu0 %v106
    %313 = vmatprep.subr.mxu0 0.0
    %314 = vmatpush1.msra.mxu0 %v107
    %315 = vmatprep.subr.mxu0 0.0
    %316 = vmatpush1.msra.mxu0 %v108
    %317 = vmatprep.subr.mxu0 0.0
    %318 = vmatpush1.msra.mxu0 %v109
    %319 = vmatprep.subr.mxu0 0.0
    %320 = vmatpush1.msra.mxu0 %v110
    %321 = vmatprep.subr.mxu0 0.0
    %322 = vmatpush1.msra.mxu0 %v111
    %323 = vmatprep.subr.mxu0 0.0
    %324 = vmatpush1.msra.mxu0 %v112
    %325 = vmatprep.subr.mxu0 0.0
    %326 = vmatpush1.msra.mxu0 %v113
    %327 = vmatprep.subr.mxu0 0.0
    %328 = vmatpush1.msra.mxu0 %v114
    %329 = vmatprep.subr.mxu0 0.0
    %330 = vmatpush1.msra.mxu0 %v115
    %331 = vmatprep.subr.mxu0 0.0
    %332 = vmatpush1.msra.mxu0 %v116
    %333 = vmatprep.subr.mxu0 0.0
    %334 = vmatpush1.msra.mxu0 %v117
    %335 = vmatprep.subr.mxu0 0.0
    %336 = vmatpush1.msra.mxu0 %v118
    %337 = vmatprep.subr.mxu0 0.0
    %338 = vmatpush1.msra.mxu0 %v119
    %339 = vmatprep.subr.mxu0 0.0
    %340 = vmatpush1.msra.mxu0 %v120
    %341 = vmatprep.subr.mxu0 0.0
    %342 = vmatpush1.msra.mxu0 %v121
    %343 = vmatprep.subr.mxu0 0.0
    %344 = vmatpush1.msra.mxu0 %v122
    %345 = vmatprep.subr.mxu0 0.0
    %346 = vmatpush1.msra.mxu0 %v123
    %347 = vmatprep.subr.mxu0 0.0
    %348 = vmatpush1.msra.mxu0 %v124
    %349 = vmatprep.subr.mxu0 0.0
    %350 = vmatpush1.msra.mxu0 %v125
    %351 = vmatprep.subr.mxu0 0.0
    %352 = vmatpush1.msra.mxu0 %v126
    %353 = vmatprep.subr.mxu0 0.0
    %354 = vmatpush1.msra.mxu0 %v127
    %355 = vmatprep.subr.mxu0 0.0
    %356 = vmatpush1.msra.mxu0 %v128
    %357 = vmatprep.subr.mxu0 0.0
    %358 = vmatpush1.msra.mxu0 %v129
    %359 = vmatprep.subr.mxu0 0.0
    %360 = vmatpush1.msra.mxu0 %v130
    %361 = vmatprep.subr.mxu0 0.0
    %362 = vmatpush1.msra.mxu0 %v131
    %363 = vmatprep.subr.mxu0 0.0
    %364 = vmatpush1.msra.mxu0 %v132
    %365 = vmatprep.subr.mxu0 0.0
    %366 = vmatpush1.msra.mxu0 %v133
    %367 = vmatprep.subr.mxu0 0.0
    %368 = vmatpush1.msra.mxu0 %v134
    %369 = vmatprep.subr.mxu0 0.0
    %370 = vmatpush1.msra.mxu0 %v135
    %371 = vmatprep.subr.mxu0 0.0
    %372 = vmatpush1.msra.mxu0 %v136
    %373 = vmatprep.subr.mxu0 0.0
    %374 = vmatpush1.msra.mxu0 %v137
    %375 = vmatprep.mubr.f32.mxu0 %v164
    %376 = vmatmul.mubr.f32.gmra.mrb[0].mxu0 %v163
    %v377 = vpop.f32.mrb[0].mxu0
    %v378 = vadd.f32 %v308, %v377
    %v379 = vpop.f32.mrb[0].mxu0
    %380 = vdwg.mxu0
    %v381 = vld [vmem:[%s2] sm:$0x7]
    %v382 = vld [vmem:[%s3] sm:$0x1]
    %v384 = vlaneseq
    %v385 = vshrl.u32 %v384, 7
    %v386 = vsub.s32 0, %v385
    %v387 = vrot.slane %v382, %v386
    %vm389 = vcmask 23552
    %v391 = vsel %vm389, %v378, 0
    %vm393 = vcmask 1042432
    %v395 = vsel %vm393, %v381, 0
    %397 = vmatprep.subr.mxu0 0.0
    %398 = vmatpush1.msra.mxu0 %v395
    %399 = vmatprep.subr.mxu0 0.0
    %400 = vmatpush1.msra.mxu0 0.0
    %401 = vmatprep.subr.mxu0 0.0
    %402 = vmatpush1.msra.mxu0 0.0
    %403 = vmatprep.subr.mxu0 0.0
    %404 = vmatpush1.msra.mxu0 0.0
    %405 = vmatprep.subr.mxu0 0.0
    %406 = vmatpush1.msra.mxu0 0.0
    %407 = vmatprep.subr.mxu0 0.0
    %408 = vmatpush1.msra.mxu0 0.0
    %409 = vmatprep.subr.mxu0 0.0
    %410 = vmatpush1.msra.mxu0 0.0
    %411 = vmatprep.subr.mxu0 0.0
    %412 = vmatpush1.msra.mxu0 0.0
    %413 = vmatprep.subr.mxu0 0.0
    %414 = vmatpush1.msra.mxu0 0.0
    %415 = vmatprep.subr.mxu0 0.0
    %416 = vmatpush1.msra.mxu0 0.0
    %417 = vmatprep.subr.mxu0 0.0
    %418 = vmatpush1.msra.mxu0 0.0
    %419 = vmatprep.subr.mxu0 0.0
    %420 = vmatpush1.msra.mxu0 0.0
    %421 = vmatprep.subr.mxu0 0.0
    %422 = vmatpush1.msra.mxu0 0.0
    %423 = vmatprep.subr.mxu0 0.0
    %424 = vmatpush1.msra.mxu0 0.0
    %425 = vmatprep.subr.mxu0 0.0
    %426 = vmatpush1.msra.mxu0 0.0
    %427 = vmatprep.subr.mxu0 0.0
    %428 = vmatpush1.msra.mxu0 0.0
    %429 = vmatprep.subr.mxu0 0.0
    %430 = vmatpush1.msra.mxu0 0.0
    %431 = vmatprep.subr.mxu0 0.0
    %432 = vmatpush1.msra.mxu0 0.0
    %433 = vmatprep.subr.mxu0 0.0
    %434 = vmatpush1.msra.mxu0 0.0
    %435 = vmatprep.subr.mxu0 0.0
    %436 = vmatpush1.msra.mxu0 0.0
    %437 = vmatprep.subr.mxu0 0.0
    %438 = vmatpush1.msra.mxu0 0.0
    %439 = vmatprep.subr.mxu0 0.0
    %440 = vmatpush1.msra.mxu0 0.0
    %441 = vmatprep.subr.mxu0 0.0
    %442 = vmatpush1.msra.mxu0 0.0
    %443 = vmatprep.subr.mxu0 0.0
    %444 = vmatpush1.msra.mxu0 0.0
    %445 = vmatprep.subr.mxu0 0.0
    %446 = vmatpush1.msra.mxu0 0.0
    %447 = vmatprep.subr.mxu0 0.0
    %448 = vmatpush1.msra.mxu0 0.0
    %449 = vmatprep.subr.mxu0 0.0
    %450 = vmatpush1.msra.mxu0 0.0
    %451 = vmatprep.subr.mxu0 0.0
    %452 = vmatpush1.msra.mxu0 0.0
    %453 = vmatprep.subr.mxu0 0.0
    %454 = vmatpush1.msra.mxu0 0.0
    %455 = vmatprep.subr.mxu0 0.0
    %456 = vmatpush1.msra.mxu0 0.0
    %457 = vmatprep.subr.mxu0 0.0
    %458 = vmatpush1.msra.mxu0 0.0
    %459 = vmatprep.subr.mxu0 0.0
    %460 = vmatpush1.msra.mxu0 0.0
    %461 = vmatprep.mubr.f32.mxu0 0.0
    %462 = vmatmul.mubr.f32.gmra.mrb[0].mxu0 %v391
    %v463 = vpop.f32.mrb[0].mxu0
    %v464 = vadd.f32 %v387, %v463
    %v465 = vpop.f32.mrb[0].mxu0
    %466 = vdwg.mxu0
    %v467 = vtanh.pop %v464
    %v468 = vld [vmem:[%s4] sm:$0x7]
    %v469 = vld [vmem:[%s5] sm:$0x1]
    %v471 = vlaneseq
    %v472 = vshrl.u32 %v471, 7
    %v473 = vsub.s32 0, %v472
    %v474 = vrot.slane %v469, %v473
    %v477 = vsel %vm393, %v468, 0
    %479 = vmatprep.subr.mxu0 0.0
    %480 = vmatpush1.msra.mxu0 %v477
    %481 = vmatprep.subr.mxu0 0.0
    %482 = vmatpush1.msra.mxu0 0.0
    %483 = vmatprep.subr.mxu0 0.0
    %484 = vmatpush1.msra.mxu0 0.0
    %485 = vmatprep.subr.mxu0 0.0
    %486 = vmatpush1.msra.mxu0 0.0
    %487 = vmatprep.subr.mxu0 0.0
    %488 = vmatpush1.msra.mxu0 0.0
    %489 = vmatprep.subr.mxu0 0.0
    %490 = vmatpush1.msra.mxu0 0.0
    %491 = vmatprep.subr.mxu0 0.0
    %492 = vmatpush1.msra.mxu0 0.0
    %493 = vmatprep.subr.mxu0 0.0
    %494 = vmatpush1.msra.mxu0 0.0
    %495 = vmatprep.subr.mxu0 0.0
    %496 = vmatpush1.msra.mxu0 0.0
    %497 = vmatprep.subr.mxu0 0.0
    %498 = vmatpush1.msra.mxu0 0.0
    %499 = vmatprep.subr.mxu0 0.0
    %500 = vmatpush1.msra.mxu0 0.0
    %501 = vmatprep.subr.mxu0 0.0
    %502 = vmatpush1.msra.mxu0 0.0
    %503 = vmatprep.subr.mxu0 0.0
    %504 = vmatpush1.msra.mxu0 0.0
    %505 = vmatprep.subr.mxu0 0.0
    %506 = vmatpush1.msra.mxu0 0.0
    %507 = vmatprep.subr.mxu0 0.0
    %508 = vmatpush1.msra.mxu0 0.0
    %509 = vmatprep.subr.mxu0 0.0
    %510 = vmatpush1.msra.mxu0 0.0
    %511 = vmatprep.subr.mxu0 0.0
    %512 = vmatpush1.msra.mxu0 0.0
    %513 = vmatprep.subr.mxu0 0.0
    %514 = vmatpush1.msra.mxu0 0.0
    %515 = vmatprep.subr.mxu0 0.0
    %516 = vmatpush1.msra.mxu0 0.0
    %517 = vmatprep.subr.mxu0 0.0
    %518 = vmatpush1.msra.mxu0 0.0
    %519 = vmatprep.subr.mxu0 0.0
    %520 = vmatpush1.msra.mxu0 0.0
    %521 = vmatprep.subr.mxu0 0.0
    %522 = vmatpush1.msra.mxu0 0.0
    %523 = vmatprep.subr.mxu0 0.0
    %524 = vmatpush1.msra.mxu0 0.0
    %525 = vmatprep.subr.mxu0 0.0
    %526 = vmatpush1.msra.mxu0 0.0
    %527 = vmatprep.subr.mxu0 0.0
    %528 = vmatpush1.msra.mxu0 0.0
    %529 = vmatprep.subr.mxu0 0.0
    %530 = vmatpush1.msra.mxu0 0.0
    %531 = vmatprep.subr.mxu0 0.0
    %532 = vmatpush1.msra.mxu0 0.0
    %533 = vmatprep.subr.mxu0 0.0
    %534 = vmatpush1.msra.mxu0 0.0
    %535 = vmatprep.subr.mxu0 0.0
    %536 = vmatpush1.msra.mxu0 0.0
    %537 = vmatprep.subr.mxu0 0.0
    %538 = vmatpush1.msra.mxu0 0.0
    %539 = vmatprep.subr.mxu0 0.0
    %540 = vmatpush1.msra.mxu0 0.0
    %541 = vmatprep.subr.mxu0 0.0
    %542 = vmatpush1.msra.mxu0 0.0
    %543 = vmatprep.mubr.f32.mxu0 0.0
    %544 = vmatmul.mubr.f32.gmra.mrb[0].mxu0 %v391
    %v545 = vpop.f32.mrb[0].mxu0
    %v546 = vadd.f32 %v474, %v545
    %v547 = vpop.f32.mrb[0].mxu0
    %548 = vdwg.mxu0
    %v549 = vtanh.pop %v546
    %v550 = vld [vmem:[%s6] sm:$0xff]
    %v551 = vld [vmem:[%s6 + $0x8] sm:$0xff]
    %v552 = vld [vmem:[%s6 + $0x10] sm:$0xff]
    %v553 = vld [vmem:[%s6 + $0x18] sm:$0xff]
    %v554 = vld [vmem:[%s6 + $0x20] sm:$0xff]
    %v555 = vld [vmem:[%s6 + $0x28] sm:$0xff]
    %v556 = vld [vmem:[%s6 + $0x30] sm:$0xff]
    %v557 = vld [vmem:[%s6 + $0x38] sm:$0xff]
    %v558 = vld [vmem:[%s6 + $0x40] sm:$0xff]
    %v559 = vld [vmem:[%s6 + $0x48] sm:$0xff]
    %v560 = vld [vmem:[%s6 + $0x50] sm:$0xff]
    %v561 = vld [vmem:[%s6 + $0x58] sm:$0xff]
    %v562 = vld [vmem:[%s6 + $0x60] sm:$0xff]
    %v563 = vld [vmem:[%s6 + $0x68] sm:$0xff]
    %v564 = vld [vmem:[%s6 + $0x70] sm:$0xff]
    %v565 = vld [vmem:[%s6 + $0x78] sm:$0xff]
    %v566 = vld [vmem:[%s6 + $0x80] sm:$0xff]
    %v567 = vld [vmem:[%s6 + $0x88] sm:$0xff]
    %v568 = vld [vmem:[%s6 + $0x90] sm:$0xff]
    %v569 = vld [vmem:[%s6 + $0x98] sm:$0xff]
    %v570 = vld [vmem:[%s6 + $0xa0] sm:$0xff]
    %v571 = vld [vmem:[%s6 + $0xa8] sm:$0xff]
    %v572 = vld [vmem:[%s6 + $0xb0] sm:$0xff]
    %v573 = vld [vmem:[%s6 + $0xb8] sm:$0xff]
    %v574 = vld [vmem:[%s7] sm:$0x3f]
    %v576 = vlaneseq
    %v577 = vshrl.u32 %v576, 7
    %v578 = vsub.s32 0, %v577
    %v579 = vrot.slane %v574, %v578
    %v580 = vlaneseq
    %v581 = vshrl.u32 %v580, 7
    %v582 = vsub.s32 1, %v581
    %v583 = vrot.slane %v574, %v582
    %v584 = vlaneseq
    %v585 = vshrl.u32 %v584, 7
    %v586 = vsub.s32 2, %v585
    %v587 = vrot.slane %v574, %v586
    %v588 = vlaneseq
    %v589 = vshrl.u32 %v588, 7
    %v590 = vsub.s32 3, %v589
    %v591 = vrot.slane %v574, %v590
    %v592 = vlaneseq
    %v593 = vshrl.u32 %v592, 7
    %v594 = vsub.s32 4, %v593
    %v595 = vrot.slane %v574, %v594
    %v596 = vlaneseq
    %v597 = vshrl.u32 %v596, 7
    %v598 = vsub.s32 5, %v597
    %v599 = vrot.slane %v574, %v598
    %vm606 = vcmask 261120
    %v608 = vsel %vm606, %v467, 0
    %610 = vmatprep.subr.mxu0 %v551
    %611 = vmatpush1.msra.mxu0 %v550
    %612 = vmatprep.subr.mxu0 %v557
    %613 = vmatpush1.msra.mxu0 %v556
    %614 = vmatprep.subr.mxu0 %v563
    %615 = vmatpush1.msra.mxu0 %v562
    %616 = vmatprep.subr.mxu0 %v569
    %617 = vmatpush1.msra.mxu0 %v568
    %618 = vmatprep.subr.mxu0 0.0
    %619 = vmatpush1.msra.mxu0 0.0
    %620 = vmatprep.subr.mxu0 0.0
    %621 = vmatpush1.msra.mxu0 0.0
    %622 = vmatprep.subr.mxu0 0.0
    %623 = vmatpush1.msra.mxu0 0.0
    %624 = vmatprep.subr.mxu0 0.0
    %625 = vmatpush1.msra.mxu0 0.0
    %626 = vmatprep.subr.mxu0 0.0
    %627 = vmatpush1.msra.mxu0 0.0
    %628 = vmatprep.subr.mxu0 0.0
    %629 = vmatpush1.msra.mxu0 0.0
    %630 = vmatprep.subr.mxu0 0.0
    %631 = vmatpush1.msra.mxu0 0.0
    %632 = vmatprep.subr.mxu0 0.0
    %633 = vmatpush1.msra.mxu0 0.0
    %634 = vmatprep.subr.mxu0 0.0
    %635 = vmatpush1.msra.mxu0 0.0
    %636 = vmatprep.subr.mxu0 0.0
    %637 = vmatpush1.msra.mxu0 0.0
    %638 = vmatprep.subr.mxu0 0.0
    %639 = vmatpush1.msra.mxu0 0.0
    %640 = vmatprep.subr.mxu0 0.0
    %641 = vmatpush1.msra.mxu0 0.0
    %642 = vmatprep.subr.mxu0 0.0
    %643 = vmatpush1.msra.mxu0 0.0
    %644 = vmatprep.subr.mxu0 0.0
    %645 = vmatpush1.msra.mxu0 0.0
    %646 = vmatprep.subr.mxu0 0.0
    %647 = vmatpush1.msra.mxu0 0.0
    %648 = vmatprep.subr.mxu0 0.0
    %649 = vmatpush1.msra.mxu0 0.0
    %650 = vmatprep.subr.mxu0 0.0
    %651 = vmatpush1.msra.mxu0 0.0
    %652 = vmatprep.subr.mxu0 0.0
    %653 = vmatpush1.msra.mxu0 0.0
    %654 = vmatprep.subr.mxu0 0.0
    %655 = vmatpush1.msra.mxu0 0.0
    %656 = vmatprep.subr.mxu0 0.0
    %657 = vmatpush1.msra.mxu0 0.0
    %658 = vmatprep.subr.mxu0 0.0
    %659 = vmatpush1.msra.mxu0 0.0
    %660 = vmatprep.subr.mxu0 0.0
    %661 = vmatpush1.msra.mxu0 0.0
    %662 = vmatprep.subr.mxu0 0.0
    %663 = vmatpush1.msra.mxu0 0.0
    %664 = vmatprep.subr.mxu0 0.0
    %665 = vmatpush1.msra.mxu0 0.0
    %666 = vmatprep.subr.mxu0 0.0
    %667 = vmatpush1.msra.mxu0 0.0
    %668 = vmatprep.subr.mxu0 0.0
    %669 = vmatpush1.msra.mxu0 0.0
    %670 = vmatprep.subr.mxu0 0.0
    %671 = vmatpush1.msra.mxu0 0.0
    %672 = vmatprep.subr.mxu0 0.0
    %673 = vmatpush1.msra.mxu0 0.0
    %674 = vmatprep.mubr.f32.mxu0 0.0
    %675 = vmatmul.mubr.f32.gmra.mrb[0].mxu0 %v608
    %v676 = vpop.f32.mrb[0].mxu0
    %v677 = vadd.f32 %v579, %v676
    %v678 = vpop.f32.mrb[0].mxu0
    %v679 = vadd.f32 %v583, %v678
    %680 = vdwg.mxu0
    %681 = vmatprep.subr.mxu0 %v553
    %682 = vmatpush1.msra.mxu0 %v552
    %683 = vmatprep.subr.mxu0 %v559
    %684 = vmatpush1.msra.mxu0 %v558
    %685 = vmatprep.subr.mxu0 %v565
    %686 = vmatpush1.msra.mxu0 %v564
    %687 = vmatprep.subr.mxu0 %v571
    %688 = vmatpush1.msra.mxu0 %v570
    %689 = vmatprep.subr.mxu0 0.0
    %690 = vmatpush1.msra.mxu0 0.0
    %691 = vmatprep.subr.mxu0 0.0
    %692 = vmatpush1.msra.mxu0 0.0
    %693 = vmatprep.subr.mxu0 0.0
    %694 = vmatpush1.msra.mxu0 0.0
    %695 = vmatprep.subr.mxu0 0.0
    %696 = vmatpush1.msra.mxu0 0.0
    %697 = vmatprep.subr.mxu0 0.0
    %698 = vmatpush1.msra.mxu0 0.0
    %699 = vmatprep.subr.mxu0 0.0
    %700 = vmatpush1.msra.mxu0 0.0
    %701 = vmatprep.subr.mxu0 0.0
    %702 = vmatpush1.msra.mxu0 0.0
    %703 = vmatprep.subr.mxu0 0.0
    %704 = vmatpush1.msra.mxu0 0.0
    %705 = vmatprep.subr.mxu0 0.0
    %706 = vmatpush1.msra.mxu0 0.0
    %707 = vmatprep.subr.mxu0 0.0
    %708 = vmatpush1.msra.mxu0 0.0
    %709 = vmatprep.subr.mxu0 0.0
    %710 = vmatpush1.msra.mxu0 0.0
    %711 = vmatprep.subr.mxu0 0.0
    %712 = vmatpush1.msra.mxu0 0.0
    %713 = vmatprep.subr.mxu0 0.0
    %714 = vmatpush1.msra.mxu0 0.0
    %715 = vmatprep.subr.mxu0 0.0
    %716 = vmatpush1.msra.mxu0 0.0
    %717 = vmatprep.subr.mxu0 0.0
    %718 = vmatpush1.msra.mxu0 0.0
    %719 = vmatprep.subr.mxu0 0.0
    %720 = vmatpush1.msra.mxu0 0.0
    %721 = vmatprep.subr.mxu0 0.0
    %722 = vmatpush1.msra.mxu0 0.0
    %723 = vmatprep.subr.mxu0 0.0
    %724 = vmatpush1.msra.mxu0 0.0
    %725 = vmatprep.subr.mxu0 0.0
    %726 = vmatpush1.msra.mxu0 0.0
    %727 = vmatprep.subr.mxu0 0.0
    %728 = vmatpush1.msra.mxu0 0.0
    %729 = vmatprep.subr.mxu0 0.0
    %730 = vmatpush1.msra.mxu0 0.0
    %731 = vmatprep.subr.mxu0 0.0
    %732 = vmatpush1.msra.mxu0 0.0
    %733 = vmatprep.subr.mxu0 0.0
    %734 = vmatpush1.msra.mxu0 0.0
    %735 = vmatprep.subr.mxu0 0.0
    %736 = vmatpush1.msra.mxu0 0.0
    %737 = vmatprep.subr.mxu0 0.0
    %738 = vmatpush1.msra.mxu0 0.0
    %739 = vmatprep.subr.mxu0 0.0
    %740 = vmatpush1.msra.mxu0 0.0
    %741 = vmatprep.subr.mxu0 0.0
    %742 = vmatpush1.msra.mxu0 0.0
    %743 = vmatprep.subr.mxu0 0.0
    %744 = vmatpush1.msra.mxu0 0.0
    %745 = vmatprep.mubr.f32.mxu0 0.0
    %746 = vmatmul.mubr.f32.gmra.mrb[0].mxu0 %v608
    %v747 = vpop.f32.mrb[0].mxu0
    %v748 = vadd.f32 %v587, %v747
    %v749 = vpop.f32.mrb[0].mxu0
    %v750 = vadd.f32 %v591, %v749
    %751 = vdwg.mxu0
    %752 = vmatprep.subr.mxu0 %v555
    %753 = vmatpush1.msra.mxu0 %v554
    %754 = vmatprep.subr.mxu0 %v561
    %755 = vmatpush1.msra.mxu0 %v560
    %756 = vmatprep.subr.mxu0 %v567
    %757 = vmatpush1.msra.mxu0 %v566
    %758 = vmatprep.subr.mxu0 %v573
    %759 = vmatpush1.msra.mxu0 %v572
    %760 = vmatprep.subr.mxu0 0.0
    %761 = vmatpush1.msra.mxu0 0.0
    %762 = vmatprep.subr.mxu0 0.0
    %763 = vmatpush1.msra.mxu0 0.0
    %764 = vmatprep.subr.mxu0 0.0
    %765 = vmatpush1.msra.mxu0 0.0
    %766 = vmatprep.subr.mxu0 0.0
    %767 = vmatpush1.msra.mxu0 0.0
    %768 = vmatprep.subr.mxu0 0.0
    %769 = vmatpush1.msra.mxu0 0.0
    %770 = vmatprep.subr.mxu0 0.0
    %771 = vmatpush1.msra.mxu0 0.0
    %772 = vmatprep.subr.mxu0 0.0
    %773 = vmatpush1.msra.mxu0 0.0
    %774 = vmatprep.subr.mxu0 0.0
    %775 = vmatpush1.msra.mxu0 0.0
    %776 = vmatprep.subr.mxu0 0.0
    %777 = vmatpush1.msra.mxu0 0.0
    %778 = vmatprep.subr.mxu0 0.0
    %779 = vmatpush1.msra.mxu0 0.0
    %780 = vmatprep.subr.mxu0 0.0
    %781 = vmatpush1.msra.mxu0 0.0
    %782 = vmatprep.subr.mxu0 0.0
    %783 = vmatpush1.msra.mxu0 0.0
    %784 = vmatprep.subr.mxu0 0.0
    %785 = vmatpush1.msra.mxu0 0.0
    %786 = vmatprep.subr.mxu0 0.0
    %787 = vmatpush1.msra.mxu0 0.0
    %788 = vmatprep.subr.mxu0 0.0
    %789 = vmatpush1.msra.mxu0 0.0
    %790 = vmatprep.subr.mxu0 0.0
    %791 = vmatpush1.msra.mxu0 0.0
    %792 = vmatprep.subr.mxu0 0.0
    %793 = vmatpush1.msra.mxu0 0.0
    %794 = vmatprep.subr.mxu0 0.0
    %795 = vmatpush1.msra.mxu0 0.0
    %796 = vmatprep.subr.mxu0 0.0
    %797 = vmatpush1.msra.mxu0 0.0
    %798 = vmatprep.subr.mxu0 0.0
    %799 = vmatpush1.msra.mxu0 0.0
    %800 = vmatprep.subr.mxu0 0.0
    %801 = vmatpush1.msra.mxu0 0.0
    %802 = vmatprep.subr.mxu0 0.0
    %803 = vmatpush1.msra.mxu0 0.0
    %804 = vmatprep.subr.mxu0 0.0
    %805 = vmatpush1.msra.mxu0 0.0
    %806 = vmatprep.subr.mxu0 0.0
    %807 = vmatpush1.msra.mxu0 0.0
    %808 = vmatprep.subr.mxu0 0.0
    %809 = vmatpush1.msra.mxu0 0.0
    %810 = vmatprep.subr.mxu0 0.0
    %811 = vmatpush1.msra.mxu0 0.0
    %812 = vmatprep.subr.mxu0 0.0
    %813 = vmatpush1.msra.mxu0 0.0
    %814 = vmatprep.subr.mxu0 0.0
    %815 = vmatpush1.msra.mxu0 0.0
    %816 = vmatprep.mubr.f32.mxu0 0.0
    %817 = vmatmul.mubr.f32.gmra.mrb[0].mxu0 %v608
    %v818 = vpop.f32.mrb[0].mxu0
    %v819 = vadd.f32 %v595, %v818
    %v820 = vpop.f32.mrb[0].mxu0
    %v821 = vadd.f32 %v599, %v820
    %822 = vdwg.mxu0
    %v823 = vld [vmem:[%s8] sm:$0xff]
    %v824 = vld [vmem:[%s8 + $0x8] sm:$0xff]
    %v825 = vld [vmem:[%s8 + $0x10] sm:$0xff]
    %v826 = vld [vmem:[%s8 + $0x18] sm:$0xff]
    %v827 = vld [vmem:[%s8 + $0x20] sm:$0xff]
    %v828 = vld [vmem:[%s8 + $0x28] sm:$0xff]
    %v829 = vld [vmem:[%s8 + $0x30] sm:$0xff]
    %v830 = vld [vmem:[%s8 + $0x38] sm:$0xff]
    %v831 = vld [vmem:[%s8 + $0x40] sm:$0xff]
    %v832 = vld [vmem:[%s8 + $0x48] sm:$0xff]
    %v833 = vld [vmem:[%s8 + $0x50] sm:$0xff]
    %v834 = vld [vmem:[%s8 + $0x58] sm:$0xff]
    %v835 = vld [vmem:[%s8 + $0x60] sm:$0xff]
    %v836 = vld [vmem:[%s8 + $0x68] sm:$0xff]
    %v837 = vld [vmem:[%s8 + $0x70] sm:$0xff]
    %v838 = vld [vmem:[%s8 + $0x78] sm:$0xff]
    %v839 = vld [vmem:[%s8 + $0x80] sm:$0xff]
    %v840 = vld [vmem:[%s8 + $0x88] sm:$0xff]
    %v841 = vld [vmem:[%s8 + $0x90] sm:$0xff]
    %v842 = vld [vmem:[%s8 + $0x98] sm:$0xff]
    %v843 = vld [vmem:[%s8 + $0xa0] sm:$0xff]
    %v844 = vld [vmem:[%s8 + $0xa8] sm:$0xff]
    %v845 = vld [vmem:[%s8 + $0xb0] sm:$0xff]
    %v846 = vld [vmem:[%s8 + $0xb8] sm:$0xff]
    %v847 = vld [vmem:[%s8 + $0xc0] sm:$0xff]
    %v848 = vld [vmem:[%s8 + $0xc8] sm:$0xff]
    %v849 = vld [vmem:[%s8 + $0xd0] sm:$0xff]
    %v850 = vld [vmem:[%s8 + $0xd8] sm:$0xff]
    %v851 = vld [vmem:[%s8 + $0xe0] sm:$0xff]
    %v852 = vld [vmem:[%s8 + $0xe8] sm:$0xff]
    %v853 = vld [vmem:[%s8 + $0xf0] sm:$0xff]
    %v854 = vld [vmem:[%s8 + $0xf8] sm:$0xff]
    %v855 = vld [vmem:[%s9] sm:$0xff]
    %v857 = vlaneseq
    %v858 = vshrl.u32 %v857, 7
    %v859 = vsub.s32 0, %v858
    %v860 = vrot.slane %v855, %v859
    %v861 = vlaneseq
    %v862 = vshrl.u32 %v861, 7
    %v863 = vsub.s32 1, %v862
    %v864 = vrot.slane %v855, %v863
    %v865 = vlaneseq
    %v866 = vshrl.u32 %v865, 7
    %v867 = vsub.s32 2, %v866
    %v868 = vrot.slane %v855, %v867
    %v869 = vlaneseq
    %v870 = vshrl.u32 %v869, 7
    %v871 = vsub.s32 3, %v870
    %v872 = vrot.slane %v855, %v871
    %v873 = vlaneseq
    %v874 = vshrl.u32 %v873, 7
    %v875 = vsub.s32 4, %v874
    %v876 = vrot.slane %v855, %v875
    %v877 = vlaneseq
    %v878 = vshrl.u32 %v877, 7
    %v879 = vsub.s32 5, %v878
    %v880 = vrot.slane %v855, %v879
    %v881 = vlaneseq
    %v882 = vshrl.u32 %v881, 7
    %v883 = vsub.s32 6, %v882
    %v884 = vrot.slane %v855, %v883
    %v885 = vlaneseq
    %v886 = vshrl.u32 %v885, 7
    %v887 = vsub.s32 7, %v886
    %v888 = vrot.slane %v855, %v887
    %v898 = vsel %vm606, %v549, 0
    %900 = vmatprep.subr.mxu0 %v824
    %901 = vmatpush1.msra.mxu0 %v823
    %902 = vmatprep.subr.mxu0 %v832
    %903 = vmatpush1.msra.mxu0 %v831
    %904 = vmatprep.subr.mxu0 %v840
    %905 = vmatpush1.msra.mxu0 %v839
    %906 = vmatprep.subr.mxu0 %v848
    %907 = vmatpush1.msra.mxu0 %v847
    %908 = vmatprep.subr.mxu0 0.0
    %909 = vmatpush1.msra.mxu0 0.0
    %910 = vmatprep.subr.mxu0 0.0
    %911 = vmatpush1.msra.mxu0 0.0
    %912 = vmatprep.subr.mxu0 0.0
    %913 = vmatpush1.msra.mxu0 0.0
    %914 = vmatprep.subr.mxu0 0.0
    %915 = vmatpush1.msra.mxu0 0.0
    %916 = vmatprep.subr.mxu0 0.0
    %917 = vmatpush1.msra.mxu0 0.0
    %918 = vmatprep.subr.mxu0 0.0
    %919 = vmatpush1.msra.mxu0 0.0
    %920 = vmatprep.subr.mxu0 0.0
    %921 = vmatpush1.msra.mxu0 0.0
    %922 = vmatprep.subr.mxu0 0.0
    %923 = vmatpush1.msra.mxu0 0.0
    %924 = vmatprep.subr.mxu0 0.0
    %925 = vmatpush1.msra.mxu0 0.0
    %926 = vmatprep.subr.mxu0 0.0
    %927 = vmatpush1.msra.mxu0 0.0
    %928 = vmatprep.subr.mxu0 0.0
    %929 = vmatpush1.msra.mxu0 0.0
    %930 = vmatprep.subr.mxu0 0.0
    %931 = vmatpush1.msra.mxu0 0.0
    %932 = vmatprep.subr.mxu0 0.0
    %933 = vmatpush1.msra.mxu0 0.0
    %934 = vmatprep.subr.mxu0 0.0
    %935 = vmatpush1.msra.mxu0 0.0
    %936 = vmatprep.subr.mxu0 0.0
    %937 = vmatpush1.msra.mxu0 0.0
    %938 = vmatprep.subr.mxu0 0.0
    %939 = vmatpush1.msra.mxu0 0.0
    %940 = vmatprep.subr.mxu0 0.0
    %941 = vmatpush1.msra.mxu0 0.0
    %942 = vmatprep.subr.mxu0 0.0
    %943 = vmatpush1.msra.mxu0 0.0
    %944 = vmatprep.subr.mxu0 0.0
    %945 = vmatpush1.msra.mxu0 0.0
    %946 = vmatprep.subr.mxu0 0.0
    %947 = vmatpush1.msra.mxu0 0.0
    %948 = vmatprep.subr.mxu0 0.0
    %949 = vmatpush1.msra.mxu0 0.0
    %950 = vmatprep.subr.mxu0 0.0
    %951 = vmatpush1.msra.mxu0 0.0
    %952 = vmatprep.subr.mxu0 0.0
    %953 = vmatpush1.msra.mxu0 0.0
    %954 = vmatprep.subr.mxu0 0.0
    %955 = vmatpush1.msra.mxu0 0.0
    %956 = vmatprep.subr.mxu0 0.0
    %957 = vmatpush1.msra.mxu0 0.0
    %958 = vmatprep.subr.mxu0 0.0
    %959 = vmatpush1.msra.mxu0 0.0
    %960 = vmatprep.subr.mxu0 0.0
    %961 = vmatpush1.msra.mxu0 0.0
    %962 = vmatprep.subr.mxu0 0.0
    %963 = vmatpush1.msra.mxu0 0.0
    %964 = vmatprep.mubr.f32.mxu0 0.0
    %965 = vmatmul.mubr.f32.gmra.mrb[0].mxu0 %v898
    %v966 = vpop.f32.mrb[0].mxu0
    %v967 = vadd.f32 %v860, %v966
    %v968 = vpop.f32.mrb[0].mxu0
    %v969 = vadd.f32 %v864, %v968
    %970 = vdwg.mxu0
    %971 = vmatprep.subr.mxu0 %v826
    %972 = vmatpush1.msra.mxu0 %v825
    %973 = vmatprep.subr.mxu0 %v834
    %974 = vmatpush1.msra.mxu0 %v833
    %975 = vmatprep.subr.mxu0 %v842
    %976 = vmatpush1.msra.mxu0 %v841
    %977 = vmatprep.subr.mxu0 %v850
    %978 = vmatpush1.msra.mxu0 %v849
    %979 = vmatprep.subr.mxu0 0.0
    %980 = vmatpush1.msra.mxu0 0.0
    %981 = vmatprep.subr.mxu0 0.0
    %982 = vmatpush1.msra.mxu0 0.0
    %983 = vmatprep.subr.mxu0 0.0
    %984 = vmatpush1.msra.mxu0 0.0
    %985 = vmatprep.subr.mxu0 0.0
    %986 = vmatpush1.msra.mxu0 0.0
    %987 = vmatprep.subr.mxu0 0.0
    %988 = vmatpush1.msra.mxu0 0.0
    %989 = vmatprep.subr.mxu0 0.0
    %990 = vmatpush1.msra.mxu0 0.0
    %991 = vmatprep.subr.mxu0 0.0
    %992 = vmatpush1.msra.mxu0 0.0
    %993 = vmatprep.subr.mxu0 0.0
    %994 = vmatpush1.msra.mxu0 0.0
    %995 = vmatprep.subr.mxu0 0.0
    %996 = vmatpush1.msra.mxu0 0.0
    %997 = vmatprep.subr.mxu0 0.0
    %998 = vmatpush1.msra.mxu0 0.0
    %999 = vmatprep.subr.mxu0 0.0
    %1000 = vmatpush1.msra.mxu0 0.0
    %1001 = vmatprep.subr.mxu0 0.0
    %1002 = vmatpush1.msra.mxu0 0.0
    %1003 = vmatprep.subr.mxu0 0.0
    %1004 = vmatpush1.msra.mxu0 0.0
    %1005 = vmatprep.subr.mxu0 0.0
    %1006 = vmatpush1.msra.mxu0 0.0
    %1007 = vmatprep.subr.mxu0 0.0
    %1008 = vmatpush1.msra.mxu0 0.0
    %1009 = vmatprep.subr.mxu0 0.0
    %1010 = vmatpush1.msra.mxu0 0.0
    %1011 = vmatprep.subr.mxu0 0.0
    %1012 = vmatpush1.msra.mxu0 0.0
    %1013 = vmatprep.subr.mxu0 0.0
    %1014 = vmatpush1.msra.mxu0 0.0
    %1015 = vmatprep.subr.mxu0 0.0
    %1016 = vmatpush1.msra.mxu0 0.0
    %1017 = vmatprep.subr.mxu0 0.0
    %1018 = vmatpush1.msra.mxu0 0.0
    %1019 = vmatprep.subr.mxu0 0.0
    %1020 = vmatpush1.msra.mxu0 0.0
    %1021 = vmatprep.subr.mxu0 0.0
    %1022 = vmatpush1.msra.mxu0 0.0
    %1023 = vmatprep.subr.mxu0 0.0
    %1024 = vmatpush1.msra.mxu0 0.0
    %1025 = vmatprep.subr.mxu0 0.0
    %1026 = vmatpush1.msra.mxu0 0.0
    %1027 = vmatprep.subr.mxu0 0.0
    %1028 = vmatpush1.msra.mxu0 0.0
    %1029 = vmatprep.subr.mxu0 0.0
    %1030 = vmatpush1.msra.mxu0 0.0
    %1031 = vmatprep.subr.mxu0 0.0
    %1032 = vmatpush1.msra.mxu0 0.0
    %1033 = vmatprep.subr.mxu0 0.0
    %1034 = vmatpush1.msra.mxu0 0.0
    %1035 = vmatprep.mubr.f32.mxu0 0.0
    %1036 = vmatmul.mubr.f32.gmra.mrb[0].mxu0 %v898
    %v1037 = vpop.f32.mrb[0].mxu0
    %v1038 = vadd.f32 %v868, %v1037
    %v1039 = vpop.f32.mrb[0].mxu0
    %v1040 = vadd.f32 %v872, %v1039
    %1041 = vdwg.mxu0
    %1042 = vmatprep.subr.mxu0 %v828
    %1043 = vmatpush1.msra.mxu0 %v827
    %1044 = vmatprep.subr.mxu0 %v836
    %1045 = vmatpush1.msra.mxu0 %v835
    %1046 = vmatprep.subr.mxu0 %v844
    %1047 = vmatpush1.msra.mxu0 %v843
    %1048 = vmatprep.subr.mxu0 %v852
    %1049 = vmatpush1.msra.mxu0 %v851
    %1050 = vmatprep.subr.mxu0 0.0
    %1051 = vmatpush1.msra.mxu0 0.0
    %1052 = vmatprep.subr.mxu0 0.0
    %1053 = vmatpush1.msra.mxu0 0.0
    %1054 = vmatprep.subr.mxu0 0.0
    %1055 = vmatpush1.msra.mxu0 0.0
    %1056 = vmatprep.subr.mxu0 0.0
    %1057 = vmatpush1.msra.mxu0 0.0
    %1058 = vmatprep.subr.mxu0 0.0
    %1059 = vmatpush1.msra.mxu0 0.0
    %1060 = vmatprep.subr.mxu0 0.0
    %1061 = vmatpush1.msra.mxu0 0.0
    %1062 = vmatprep.subr.mxu0 0.0
    %1063 = vmatpush1.msra.mxu0 0.0
    %1064 = vmatprep.subr.mxu0 0.0
    %1065 = vmatpush1.msra.mxu0 0.0
    %1066 = vmatprep.subr.mxu0 0.0
    %1067 = vmatpush1.msra.mxu0 0.0
    %1068 = vmatprep.subr.mxu0 0.0
    %1069 = vmatpush1.msra.mxu0 0.0
    %1070 = vmatprep.subr.mxu0 0.0
    %1071 = vmatpush1.msra.mxu0 0.0
    %1072 = vmatprep.subr.mxu0 0.0
    %1073 = vmatpush1.msra.mxu0 0.0
    %1074 = vmatprep.subr.mxu0 0.0
    %1075 = vmatpush1.msra.mxu0 0.0
    %1076 = vmatprep.subr.mxu0 0.0
    %1077 = vmatpush1.msra.mxu0 0.0
    %1078 = vmatprep.subr.mxu0 0.0
    %1079 = vmatpush1.msra.mxu0 0.0
    %1080 = vmatprep.subr.mxu0 0.0
    %1081 = vmatpush1.msra.mxu0 0.0
    %1082 = vmatprep.subr.mxu0 0.0
    %1083 = vmatpush1.msra.mxu0 0.0
    %1084 = vmatprep.subr.mxu0 0.0
    %1085 = vmatpush1.msra.mxu0 0.0
    %1086 = vmatprep.subr.mxu0 0.0
    %1087 = vmatpush1.msra.mxu0 0.0
    %1088 = vmatprep.subr.mxu0 0.0
    %1089 = vmatpush1.msra.mxu0 0.0
    %1090 = vmatprep.subr.mxu0 0.0
    %1091 = vmatpush1.msra.mxu0 0.0
    %1092 = vmatprep.subr.mxu0 0.0
    %1093 = vmatpush1.msra.mxu0 0.0
    %1094 = vmatprep.subr.mxu0 0.0
    %1095 = vmatpush1.msra.mxu0 0.0
    %1096 = vmatprep.subr.mxu0 0.0
    %1097 = vmatpush1.msra.mxu0 0.0
    %1098 = vmatprep.subr.mxu0 0.0
    %1099 = vmatpush1.msra.mxu0 0.0
    %1100 = vmatprep.subr.mxu0 0.0
    %1101 = vmatpush1.msra.mxu0 0.0
    %1102 = vmatprep.subr.mxu0 0.0
    %1103 = vmatpush1.msra.mxu0 0.0
    %1104 = vmatprep.subr.mxu0 0.0
    %1105 = vmatpush1.msra.mxu0 0.0
    %1106 = vmatprep.mubr.f32.mxu0 0.0
    %1107 = vmatmul.mubr.f32.gmra.mrb[0].mxu0 %v898
    %v1108 = vpop.f32.mrb[0].mxu0
    %v1109 = vadd.f32 %v876, %v1108
    %v1110 = vpop.f32.mrb[0].mxu0
    %v1111 = vadd.f32 %v880, %v1110
    %1112 = vdwg.mxu0
    %1113 = vmatprep.subr.mxu0 %v830
    %1114 = vmatpush1.msra.mxu0 %v829
    %1115 = vmatprep.subr.mxu0 %v838
    %1116 = vmatpush1.msra.mxu0 %v837
    %1117 = vmatprep.subr.mxu0 %v846
    %1118 = vmatpush1.msra.mxu0 %v845
    %1119 = vmatprep.subr.mxu0 %v854
    %1120 = vmatpush1.msra.mxu0 %v853
    %1121 = vmatprep.subr.mxu0 0.0
    %1122 = vmatpush1.msra.mxu0 0.0
    %1123 = vmatprep.subr.mxu0 0.0
    %1124 = vmatpush1.msra.mxu0 0.0
    %1125 = vmatprep.subr.mxu0 0.0
    %1126 = vmatpush1.msra.mxu0 0.0
    %1127 = vmatprep.subr.mxu0 0.0
    %1128 = vmatpush1.msra.mxu0 0.0
    %1129 = vmatprep.subr.mxu0 0.0
    %1130 = vmatpush1.msra.mxu0 0.0
    %1131 = vmatprep.subr.mxu0 0.0
    %1132 = vmatpush1.msra.mxu0 0.0
    %1133 = vmatprep.subr.mxu0 0.0
    %1134 = vmatpush1.msra.mxu0 0.0
    %1135 = vmatprep.subr.mxu0 0.0
    %1136 = vmatpush1.msra.mxu0 0.0
    %1137 = vmatprep.subr.mxu0 0.0
    %1138 = vmatpush1.msra.mxu0 0.0
    %1139 = vmatprep.subr.mxu0 0.0
    %1140 = vmatpush1.msra.mxu0 0.0
    %1141 = vmatprep.subr.mxu0 0.0
    %1142 = vmatpush1.msra.mxu0 0.0
    %1143 = vmatprep.subr.mxu0 0.0
    %1144 = vmatpush1.msra.mxu0 0.0
    %1145 = vmatprep.subr.mxu0 0.0
    %1146 = vmatpush1.msra.mxu0 0.0
    %1147 = vmatprep.subr.mxu0 0.0
    %1148 = vmatpush1.msra.mxu0 0.0
    %1149 = vmatprep.subr.mxu0 0.0
    %1150 = vmatpush1.msra.mxu0 0.0
    %1151 = vmatprep.subr.mxu0 0.0
    %1152 = vmatpush1.msra.mxu0 0.0
    %1153 = vmatprep.subr.mxu0 0.0
    %1154 = vmatpush1.msra.mxu0 0.0
    %1155 = vmatprep.subr.mxu0 0.0
    %1156 = vmatpush1.msra.mxu0 0.0
    %1157 = vmatprep.subr.mxu0 0.0
    %1158 = vmatpush1.msra.mxu0 0.0
    %1159 = vmatprep.subr.mxu0 0.0
    %1160 = vmatpush1.msra.mxu0 0.0
    %1161 = vmatprep.subr.mxu0 0.0
    %1162 = vmatpush1.msra.mxu0 0.0
    %1163 = vmatprep.subr.mxu0 0.0
    %1164 = vmatpush1.msra.mxu0 0.0
    %1165 = vmatprep.subr.mxu0 0.0
    %1166 = vmatpush1.msra.mxu0 0.0
    %1167 = vmatprep.subr.mxu0 0.0
    %1168 = vmatpush1.msra.mxu0 0.0
    %1169 = vmatprep.subr.mxu0 0.0
    %1170 = vmatpush1.msra.mxu0 0.0
    %1171 = vmatprep.subr.mxu0 0.0
    %1172 = vmatpush1.msra.mxu0 0.0
    %1173 = vmatprep.subr.mxu0 0.0
    %1174 = vmatpush1.msra.mxu0 0.0
    %1175 = vmatprep.subr.mxu0 0.0
    %1176 = vmatpush1.msra.mxu0 0.0
    %1177 = vmatprep.mubr.f32.mxu0 0.0
    %1178 = vmatmul.mubr.f32.gmra.mrb[0].mxu0 %v898
    %v1179 = vpop.f32.mrb[0].mxu0
    %v1180 = vadd.f32 %v884, %v1179
    %v1181 = vpop.f32.mrb[0].mxu0
    %v1182 = vadd.f32 %v888, %v1181
    %1183 = vdwg.mxu0
    %v1184 = vxor.u32 %v967, 2147483648
    %v1185 = vxor.u32 %v969, 2147483648
    %v1186 = vxor.u32 %v1038, 2147483648
    %v1187 = vxor.u32 %v1040, 2147483648
    %v1188 = vxor.u32 %v1109, 2147483648
    %v1189 = vxor.u32 %v1111, 2147483648
    %v1190 = vmul.f32 %v1184, 1.442695
    %v1191 = vpow.pop %v1190
    %v1192 = vmul.f32 %v1185, 1.442695
    %v1193 = vpow.pop %v1192
    %v1194 = vmul.f32 %v1186, 1.442695
    %v1195 = vpow.pop %v1194
    %v1196 = vmul.f32 %v1187, 1.442695
    %v1197 = vpow.pop %v1196
    %v1198 = vmul.f32 %v1188, 1.442695
    %v1199 = vpow.pop %v1198
    %v1200 = vmul.f32 %v1189, 1.442695
    %v1201 = vpow.pop %v1200
    %v1202 = vadd.f32 %v1191, 1.0
    %v1203 = vadd.f32 %v1193, 1.0
    %v1204 = vadd.f32 %v1195, 1.0
    %v1205 = vadd.f32 %v1197, 1.0
    %v1206 = vadd.f32 %v1199, 1.0
    %v1207 = vadd.f32 %v1201, 1.0
    %v1208 = vrcp.pop %v1202
    %v1209 = vmul.f32 1.0, %v1208
    %v1210 = vrcp.pop %v1203
    %v1211 = vmul.f32 1.0, %v1210
    %v1212 = vrcp.pop %v1204
    %v1213 = vmul.f32 1.0, %v1212
    %v1214 = vrcp.pop %v1205
    %v1215 = vmul.f32 1.0, %v1214
    %v1216 = vrcp.pop %v1206
    %v1217 = vmul.f32 1.0, %v1216
    %v1218 = vrcp.pop %v1207
    %v1219 = vmul.f32 1.0, %v1218
    %v1220 = vxor.u32 %v677, 2147483648
    %v1221 = vxor.u32 %v679, 2147483648
    %v1222 = vxor.u32 %v748, 2147483648
    %v1223 = vxor.u32 %v750, 2147483648
    %v1224 = vxor.u32 %v819, 2147483648
    %v1225 = vxor.u32 %v821, 2147483648
    %v1226 = vmul.f32 %v1220, 1.442695
    %v1227 = vpow.pop %v1226
    %v1228 = vmul.f32 %v1221, 1.442695
    %v1229 = vpow.pop %v1228
    %v1230 = vmul.f32 %v1222, 1.442695
    %v1231 = vpow.pop %v1230
    %v1232 = vmul.f32 %v1223, 1.442695
    %v1233 = vpow.pop %v1232
    %v1234 = vmul.f32 %v1224, 1.442695
    %v1235 = vpow.pop %v1234
    %v1236 = vmul.f32 %v1225, 1.442695
    %v1237 = vpow.pop %v1236
    %v1238 = vadd.f32 %v1227, 1.0
    %v1239 = vadd.f32 %v1229, 1.0
    %v1240 = vadd.f32 %v1231, 1.0
    %v1241 = vadd.f32 %v1233, 1.0
    %v1242 = vadd.f32 %v1235, 1.0
    %v1243 = vadd.f32 %v1237, 1.0
    %v1244 = vrcp.pop %v1238
    %v1245 = vmul.f32 1.0, %v1244
    %v1246 = vrcp.pop %v1239
    %v1247 = vmul.f32 1.0, %v1246
    %v1248 = vrcp.pop %v1240
    %v1249 = vmul.f32 1.0, %v1248
    %v1250 = vrcp.pop %v1241
    %v1251 = vmul.f32 1.0, %v1250
    %v1252 = vrcp.pop %v1242
    %v1253 = vmul.f32 1.0, %v1252
    %v1254 = vrcp.pop %v1243
    %v1255 = vmul.f32 1.0, %v1254
    %v1256 = vxor.u32 %v1180, 2147483648
    %v1257 = vxor.u32 %v1182, 2147483648
    %v1258 = vmul.f32 %v1256, 1.442695
    %v1259 = vpow.pop %v1258
    %v1260 = vmul.f32 %v1257, 1.442695
    %v1261 = vpow.pop %v1260
    %v1262 = vadd.f32 %v1259, 1.0
    %v1263 = vadd.f32 %v1261, 1.0
    %v1264 = vrcp.pop %v1262
    %v1265 = vmul.f32 1.0, %v1264
    %v1266 = vrcp.pop %v1263
    %v1267 = vmul.f32 1.0, %v1266
    %v1268 = vadd.f32 %v1265, 1e-05
    %v1269 = vadd.f32 %v1267, 1e-05
    %v1270 = vlog2.pop %v1268
    %v1271 = vmul.f32 %v1270, 0.6931472
    %v1272 = vlog2.pop %v1269
    %v1273 = vmul.f32 %v1272, 0.6931472
    %v1274 = vsub.f32 1.0, %v1265
    %v1275 = vsub.f32 1.0, %v1267
    %v1276 = vadd.f32 %v1274, 1e-05
    %v1277 = vadd.f32 %v1275, 1e-05
    %v1278 = vlog2.pop %v1276
    %v1279 = vmul.f32 %v1278, 0.6931472
    %v1280 = vlog2.pop %v1277
    %v1281 = vmul.f32 %v1280, 0.6931472
    %v1288 = vcombine.low %v1209, %v1211
    %v1289 = vcombine.low %v1213, %v1215
    %v1291 = vunpack.c.l.s4 1983009808
    %v1292 = vunpack.c.0.s8 %v1291
    %v1293 = vlaneseq
    %v1294 = vshrl.u32 %v1293, 7
    %v1295 = vsub.s32 %v1292, %v1294
    %v1296 = vrot.slane %v1288, %v1295
    %v1298 = vunpack.c.l.s4 1983009808
    %v1299 = vunpack.c.0.s8 %v1298
    %v1300 = vlaneseq
    %v1301 = vshrl.u32 %v1300, 7
    %v1302 = vsub.s32 %v1299, %v1301
    %v1303 = vrot.slane %v1289, %v1302
    %v1304 = vcombine.low %v1296, %v1303
    %v1305 = vcombine.low %v1217, %v1219
    %v1307 = vunpack.c.l.s4 1983009808
    %v1308 = vunpack.c.0.s8 %v1307
    %v1309 = vlaneseq
    %v1310 = vshrl.u32 %v1309, 7
    %v1311 = vsub.s32 %v1308, %v1310
    %v1312 = vrot.slane %v1305, %v1311
    %v1315 = vsub.f32 %v40, %v1304
    %v1316 = vsub.f32 %v41, %v1312
    %v1317 = vmul.f32 %v1315, %v1315
    %v1318 = vmul.f32 %v1316, %v1316
    %v1319 = vmul.f32 %v1317, 22.222221
    %v1320 = vmul.f32 %v1318, 22.222221
    %v1321 = vsub.f32 0.9781815, %v1319
    %v1322 = vsub.f32 0.9781815, %v1320
    %v1325 = vcombine.low %v1271, %v1273
    %v1327 = vunpack.c.l.s4 1983009808
    %v1328 = vunpack.c.0.s8 %v1327
    %v1329 = vlaneseq
    %v1330 = vshrl.u32 %v1329, 7
    %v1331 = vsub.s32 %v1328, %v1330
    %v1332 = vrot.slane %v1325, %v1331
    %v1333 = vcombine.low %v1332, %v1332
    %v1336 = vadd.f32 %v1321, %v1333
    %v1337 = vadd.f32 %v1322, %v1332
    %v1344 = vcombine.low %v1245, %v1247
    %v1345 = vcombine.low %v1249, %v1251
    %v1347 = vunpack.c.l.s4 1983009808
    %v1348 = vunpack.c.0.s8 %v1347
    %v1349 = vlaneseq
    %v1350 = vshrl.u32 %v1349, 7
    %v1351 = vsub.s32 %v1348, %v1350
    %v1352 = vrot.slane %v1344, %v1351
    %v1354 = vunpack.c.l.s4 1983009808
    %v1355 = vunpack.c.0.s8 %v1354
    %v1356 = vlaneseq
    %v1357 = vshrl.u32 %v1356, 7
    %v1358 = vsub.s32 %v1355, %v1357
    %v1359 = vrot.slane %v1345, %v1358
    %v1360 = vcombine.low %v1352, %v1359
    %v1361 = vcombine.low %v1253, %v1255
    %v1363 = vunpack.c.l.s4 1983009808
    %v1364 = vunpack.c.0.s8 %v1363
    %v1365 = vlaneseq
    %v1366 = vshrl.u32 %v1365, 7
    %v1367 = vsub.s32 %v1364, %v1366
    %v1368 = vrot.slane %v1361, %v1367
    %v1371 = vsub.f32 %v40, %v1360
    %v1372 = vsub.f32 %v41, %v1368
    %v1373 = vmul.f32 %v1371, %v1371
    %v1374 = vmul.f32 %v1372, %v1372
    %v1375 = vmul.f32 %v1373, 22.222221
    %v1376 = vmul.f32 %v1374, 22.222221
    %v1377 = vsub.f32 0.9781815, %v1375
    %v1378 = vsub.f32 0.9781815, %v1376
    %v1381 = vcombine.low %v1279, %v1281
    %v1383 = vunpack.c.l.s4 1983009808
    %v1384 = vunpack.c.0.s8 %v1383
    %v1385 = vlaneseq
    %v1386 = vshrl.u32 %v1385, 7
    %v1387 = vsub.s32 %v1384, %v1386
    %v1388 = vrot.slane %v1381, %v1387
    %v1389 = vcombine.low %v1388, %v1388
    %v1392 = vadd.f32 %v1377, %v1389
    %v1393 = vadd.f32 %v1378, %v1388
    %v1394 = vmax.f32 %v1336, %v1392
    %v1395 = vmax.f32 %v1337, %v1393
    %v1396 = vsub.f32 %v1336, %v1392
    %v1397 = vsub.f32 %v1337, %v1393
    %v1398 = vand.u32 2147483647, %v1396
    %v1399 = vand.u32 2147483647, %v1397
    %v1400 = vsub.f32 0.0, %v1398
    %v1401 = vsub.f32 0.0, %v1399
    %v1402 = vmul.f32 %v1400, 1.442695
    %v1403 = vpow.pop %v1402
    %v1404 = vmul.f32 %v1401, 1.442695
    %v1405 = vpow.pop %v1404
    %v1406 = vadd.f32 %v1403, 1.0
    %v1407 = vadd.f32 %v1405, 1.0
    %v1408 = vlog2.pop %v1406
    %v1409 = vmul.f32 %v1408, 0.6931472
    %v1410 = vlog2.pop %v1407
    %v1411 = vmul.f32 %v1410, 0.6931472
    %v1412 = vadd.f32 %v1394, %v1409
    %v1413 = vadd.f32 %v1395, %v1411
    %v1416 = vcombine.high %v1412, %v1412
    %v1418 = vunpack.c.l.s4 1983009808
    %v1419 = vunpack.c.0.s8 %v1418
    %v1420 = vlaneseq
    %v1421 = vshrl.u32 %v1420, 7
    %v1422 = vsub.s32 %v1419, %v1421
    %v1423 = vrot.slane %v1412, %v1422
    %v1425 = vunpack.c.l.s4 1983009808
    %v1426 = vunpack.c.0.s8 %v1425
    %v1427 = vlaneseq
    %v1428 = vshrl.u32 %v1427, 7
    %v1429 = vsub.s32 %v1426, %v1428
    %v1430 = vrot.slane %v1416, %v1429
    %v1431 = vcombine.high %v1423, %v1423
    %v1432 = vcombine.high %v1430, %v1430
    %v1434 = vunpack.c.l.s4 1983009808
    %v1435 = vunpack.c.0.s8 %v1434
    %v1436 = vlaneseq
    %v1437 = vshrl.u32 %v1436, 7
    %v1438 = vsub.s32 %v1435, %v1437
    %v1439 = vrot.slane %v1413, %v1438
    %v1440 = vcombine.high %v1439, %v1439
    %vm1447 = vcmask 1041408
    %v1448 = vsel %vm1447, %v1423, 0.0
    %v1449 = vsel %vm1447, %v1431, 0.0
    %v1450 = vadd.f32 %v1448, %v1449
    %v1451 = vsel %vm1447, %v1430, 0.0
    %v1452 = vadd.f32 %v1450, %v1451
    %v1453 = vsel %vm1447, %v1432, 0.0
    %v1454 = vadd.f32 %v1452, %v1453
    %v1455 = vsel %vm1447, %v1439, 0.0
    %v1456 = vadd.f32 %v1454, %v1455
    %v1457 = vsel %vm1447, %v1440, 0.0
    %v1458 = vadd.f32 %v1456, %v1457
    %1459 = vadd.xlane.f32.xlu0 %v1458
    %v1460 = vpop.xlane.xlu0 %1459
    %v1461 = vsub.f32 %v1209, %v1245
    %v1462 = vsub.f32 %v1211, %v1247
    %v1463 = vsub.f32 %v1213, %v1249
    %v1464 = vsub.f32 %v1215, %v1251
    %v1465 = vsub.f32 %v1217, %v1253
    %v1466 = vsub.f32 %v1219, %v1255
    %v1467 = vmul.f32 %v1265, %v1461
    %v1468 = vmul.f32 %v1267, %v1462
    %v1469 = vmul.f32 %v1265, %v1463
    %v1470 = vmul.f32 %v1267, %v1464
    %v1471 = vmul.f32 %v1265, %v1465
    %v1472 = vmul.f32 %v1267, %v1466
    %v1473 = vadd.f32 %v1245, %v1467
    %v1474 = vadd.f32 %v1247, %v1468
    %v1475 = vadd.f32 %v1249, %v1469
    %v1476 = vadd.f32 %v1251, %v1470
    %v1477 = vadd.f32 %v1253, %v1471
    %v1478 = vadd.f32 %v1255, %v1472
    %v1479 = vsub.f32 %v1473, %v147
    %v1480 = vsub.f32 %v1474, %v155
    %v1481 = vsub.f32 %v1475, %v154
    %v1482 = vsub.f32 %v1476, %v156
    %v1483 = vsub.f32 %v1477, %v163
    %v1484 = vsub.f32 %v1478, %v164
    %v1485 = vmul.f32 %v1479, %v1479
    %v1486 = vmul.f32 %v1480, %v1480
    %v1487 = vmul.f32 %v1481, %v1481
    %v1488 = vmul.f32 %v1482, %v1482
    %v1489 = vmul.f32 %v1483, %v1483
    %v1490 = vmul.f32 %v1484, %v1484
    %v1491 = vsel %vm1447, %v1485, 0.0
    %v1492 = vsel %vm1447, %v1486, 0.0
    %v1493 = vadd.f32 %v1491, %v1492
    %v1494 = vsel %vm1447, %v1487, 0.0
    %v1495 = vadd.f32 %v1493, %v1494
    %v1496 = vsel %vm1447, %v1488, 0.0
    %v1497 = vadd.f32 %v1495, %v1496
    %v1498 = vsel %vm1447, %v1489, 0.0
    %v1499 = vadd.f32 %v1497, %v1498
    %v1500 = vsel %vm1447, %v1490, 0.0
    %v1501 = vadd.f32 %v1499, %v1500
    %1502 = vadd.xlane.f32.xlu0 %v1501
    %v1503 = vpop.xlane.xlu0 %1502
    %v1504 = vmul.f32 %v549, %v549
    %vm1505 = vcmask 254976
    %v1506 = vsel %vm1505, %v1504, 0.0
    %1507 = vadd.xlane.f32.xlu0 %v1506
    %v1508 = vpop.xlane.xlu0 %1507
    %v1509 = vmul.f32 %v1508, 0.5
    %v1510 = vmul.f32 %v467, %v467
    %v1511 = vsel %vm1505, %v1510, 0.0
    %1512 = vadd.xlane.f32.xlu0 %v1511
    %v1513 = vpop.xlane.xlu0 %1512
    %v1514 = vmul.f32 %v1513, 0.5
    %v1515 = vsub.f32 %v1460, %v1514
    %v1516 = vsub.f32 %v1515, %v1509
    %v1523 = vcombine.low %v1473, %v1474
    %v1524 = vcombine.low %v1475, %v1476
    %v1526 = vunpack.c.l.s4 1983009808
    %v1527 = vunpack.c.0.s8 %v1526
    %v1528 = vlaneseq
    %v1529 = vshrl.u32 %v1528, 7
    %v1530 = vsub.s32 %v1527, %v1529
    %v1531 = vrot.slane %v1523, %v1530
    %v1533 = vunpack.c.l.s4 1983009808
    %v1534 = vunpack.c.0.s8 %v1533
    %v1535 = vlaneseq
    %v1536 = vshrl.u32 %v1535, 7
    %v1537 = vsub.s32 %v1534, %v1536
    %v1538 = vrot.slane %v1524, %v1537
    %v1539 = vcombine.low %v1531, %v1538
    %v1540 = vcombine.low %v1477, %v1478
    %v1542 = vunpack.c.l.s4 1983009808
    %v1543 = vunpack.c.0.s8 %v1542
    %v1544 = vlaneseq
    %v1545 = vshrl.u32 %v1544, 7
    %v1546 = vsub.s32 %v1543, %v1545
    %v1547 = vrot.slane %v1540, %v1546
    %1550 = vst [vmem:[#allocation2] sm:$0xff] %v1539
    %1551 = vst [vmem:[#allocation2 + $0x8] sm:$0xf] %v1547
    %v1554 = vcombine.low %v1265, %v1267
    %v1556 = vunpack.c.l.s4 1983009808
    %v1557 = vunpack.c.0.s8 %v1556
    %v1558 = vlaneseq
    %v1559 = vshrl.u32 %v1558, 7
    %v1560 = vsub.s32 %v1557, %v1559
    %v1561 = vrot.slane %v1554, %v1560
    %1563 = vst [vmem:[#allocation4] sm:$0xf] %v1561
    %v1567 = vcombine.low %v1460, %v1503
    %v1569 = vunpack.c.l.s4 1983009808
    %v1570 = vunpack.c.0.s8 %v1569
    %v1571 = vlaneseq
    %v1572 = vshrl.u32 %v1571, 7
    %v1573 = vsub.s32 %v1570, %v1572
    %v1574 = vrot.slane %v1567, %v1573
    %v1576 = vunpack.c.l.s4 1983009808
    %v1577 = vunpack.c.0.s8 %v1576
    %v1578 = vlaneseq
    %v1579 = vshrl.u32 %v1578, 7
    %v1580 = vsub.s32 %v1577, %v1579
    %v1581 = vrot.slane %v1516, %v1580
    %v1582 = vcombine.low %v1574, %v1581
    %1584 = vst [vmem:[#allocation6] sm:$0x3f] %v1582
    // Predicated region
    $region42: #{tpu_custom_call.1} parent=1 // pred_check
      _
    $region43: #{tpu_custom_call.1} parent=1 // pred_check_branch
      %1586 = sbr.rel (0) target = $region45
    $region44: #{tpu_custom_call.1} parent=1 // pred_region
      %s1588 = ssub.s32 192, 192
      %1589 = vsyncadd [#allocation3], %s1588
      %s1591 = sshll.u32 [#allocation2], 4
      %s1592 = int_to_ptr.vmem [resolvable:$true] %s1591
      %1594 = dma.vmem_to_hbm [thread:$0]  %s1592, 192, %s10, [#allocation3]
    $region45: #{tpu_custom_call.1} parent=1 // pred_fallthru
      _
    // Predicated region
    $region46: #{tpu_custom_call.1} parent=1 // pred_check
      _
    $region47: #{tpu_custom_call.1} parent=1 // pred_check_branch
      %1596 = sbr.rel (0) target = $region49
    $region48: #{tpu_custom_call.1} parent=1 // pred_region
      %s1598 = ssub.s32 64, 64
      %1599 = vsyncadd [#allocation5], %s1598
      %s1601 = sshll.u32 [#allocation4], 4
      %s1602 = int_to_ptr.vmem [resolvable:$true] %s1601
      %1604 = dma.vmem_to_hbm [thread:$0]  %s1602, 64, %s11, [#allocation5]
    $region49: #{tpu_custom_call.1} parent=1 // pred_fallthru
      _
    // Predicated region
    $region50: #{tpu_custom_call.1} parent=1 // pred_check
      _
    $region51: #{tpu_custom_call.1} parent=1 // pred_check_branch
      %1606 = sbr.rel (0) target = $region53
    $region52: #{tpu_custom_call.1} parent=1 // pred_region
      %s1608 = ssub.s32 96, 96
      %1609 = vsyncadd [#allocation5], %s1608
      %s1611 = sshll.u32 [#allocation6], 4
      %s1612 = int_to_ptr.vmem [resolvable:$true] %s1611
      %1614 = dma.vmem_to_hbm [thread:$0]  %s1612, 96, %s12, [#allocation5]
    $region53: #{tpu_custom_call.1} parent=1 // pred_fallthru
      _
    // Predicated region
    $region54: #{tpu_custom_call.1} parent=1 // pred_check
      _
    $region55: #{tpu_custom_call.1} parent=1 // pred_check_branch
      %1616 = sbr.rel (0) target = $region57
    $region56: #{tpu_custom_call.1} parent=1 // pred_region
      %1617 = dma.done [#allocation3], 192
    $region57: #{tpu_custom_call.1} parent=1 // pred_fallthru
      _
    // Predicated region
    $region58: #{tpu_custom_call.1} parent=1 // pred_check
      _
    $region59: #{tpu_custom_call.1} parent=1 // pred_check_branch
      %1619 = sbr.rel (0) target = $region61
    $region60: #{tpu_custom_call.1} parent=1 // pred_region
      %1620 = dma.done [#allocation5], 64
    $region61: #{tpu_custom_call.1} parent=1 // pred_fallthru
      _
    // Predicated region
    $region62: #{tpu_custom_call.1} parent=1 // pred_check
      _
    $region63: #{tpu_custom_call.1} parent=1 // pred_check_branch
      %1622 = sbr.rel (0) target = $region65
    $region64: #{tpu_custom_call.1} parent=1 // pred_region
      %1623 = dma.done [#allocation5], 96
    $region65: #{tpu_custom_call.1} parent=1 // pred_fallthru
      _
    %1624 = vsyncpa [#allocation3], 1
    %1625 = vsyncpa [#allocation5], 1

</llo_original>
